<compile_context>
chip_gen: v5e
topology: v5e:2x2
jax: 0.10.0
libtpu: 0.0.40
codegen_flags: <defaults>
</compile_context>

<pallas_src>
import functools

import numpy as np
import jax
import jax.numpy as jnp
from jax.experimental import pallas as pl
from jax.experimental.pallas import tpu as pltpu

BN_EPS = 1e-3

# ----------------------------- block config (small, deterministic) ----------
N = 2            # batch
CIN = 8          # input_filters
H = W = 16       # spatial
EXPAND = 4       # expand_ratio
OUP = CIN * EXPAND       # 32
K = 3            # depthwise kernel size
STRIDE = 1
SE_RATIO = 0.25
CSQ = max(1, int(CIN * SE_RATIO))   # 2
COUT = CIN       # output_filters (== input_filters so id-skip is active)
PAD = (K - 1) // 2


# ============================ fused Pallas kernel ============================

def _mbconv_kernel(x_ref, wexp_ref, cmb_ref, wproj_ref, small_ref, bse1_ref,
                   o_ref, *, h, w, k, pad, csq, cout):
    """One image per grid step.  Layout: channels on sublanes, H*W on lanes."""
    hw = h * w
    x = x_ref[0]                                                     # (CIN, HW) f32

    # Unpack the small-vector tile (static slices -> cheap masked loads).
    b0 = small_ref[:, 0:1]                                           # (OUP, 1)
    b1 = small_ref[:, 1:2]                                           # (OUP, 1)
    b2 = small_ref[:cout, 2:3]                                       # (COUT, 1)
    bse2 = small_ref[:, 3:4]                                         # (OUP, 1)
    wse1t = small_ref[:, 4:4 + csq]                                  # (OUP, CSQ)
    wse2 = small_ref[:, 4 + csq:4 + 2 * csq]                         # (OUP, CSQ)

    # ---- expand 1x1 conv (BN scale pre-folded into rows) + bias + swish -----
    y = jnp.dot(wexp_ref[...], x, preferred_element_type=jnp.float32) + b0
    y = y * jax.nn.sigmoid(y)                                        # (OUP, HW)

    # ---- depthwise k x k (stride 1, SAME) + bn1 bias + swish ----------------
    # cmb[tap] already contains edge-mask * (dw weight * bn1 scale).
    # Lane shift via pltpu.roll (XLU slot); wrap-around killed by the mask
    # baked into cmb.  Each roll is consumed immediately by its accumulate.
    center = pad * k + pad
    acc = y * cmb_ref[center]                                        # center tap
    for dy in range(k):
        for dx in range(k):
            tap = dy * k + dx
            if tap == center:
                continue
            off = (dy - pad) * w + (dx - pad)
            shifted = pltpu.roll(y, shift=(-off) % hw, axis=1)
            acc = acc + shifted * cmb_ref[tap]
    z = acc + b1
    z = z * jax.nn.sigmoid(z)                                        # (OUP, HW)

    # ---- squeeze & excitation (VPU/XLU only, gate applied in-register) ------
    pooled = jnp.mean(z, axis=1, keepdims=True)                      # (OUP, 1)
    t = jnp.sum(pooled * wse1t, axis=0, keepdims=True) + bse1_ref[...]   # (1, CSQ)
    t = t * jax.nn.sigmoid(t)
    g = jnp.sum(t * wse2, axis=1, keepdims=True) + bse2              # (OUP, 1)
    z = z * jax.nn.sigmoid(g)

    # ---- project 1x1 conv (BN scale pre-folded) + bias + identity skip ------
    out = jnp.dot(wproj_ref[...], z, preferred_element_type=jnp.float32) + b2
    out = out + x                                                    # id skip
    o_ref[0] = out.astype(o_ref.dtype)


# ============================ helpers ========================================

def fold_bn(gamma, beta, mean, var, eps=BN_EPS):
    scale = gamma / jnp.sqrt(var + eps)
    bias = beta - mean * scale
    return scale, bias


def _dw_masks(h, w, k, pad):
    """Static 0/1 validity masks (K*K, 1, H*W) for the shifted depthwise taps."""
    hh, ww = np.meshgrid(np.arange(h), np.arange(w), indexing="ij")
    masks = []
    for dy in range(k):
        oy = dy - pad
        for dx in range(k):
            ox = dx - pad
            valid = ((hh + oy >= 0) & (hh + oy < h) &
                     (ww + ox >= 0) & (ww + ox < w))
            masks.append(valid.reshape(1, h * w))
    return jnp.asarray(np.stack(masks, axis=0), dtype=jnp.float32)


# ============================ parameter setup (PyTorch layouts) ==============

def init_params(key):
    ks = jax.random.split(key, 16)
    p = {}
    p["w_exp"] = jax.random.normal(ks[0], (OUP, CIN), jnp.float32) * 0.1    # (out,in)
    p["bn0"] = (1.0 + 0.1 * jax.random.normal(ks[1], (OUP,)),
                0.1 * jax.random.normal(ks[2], (OUP,)),
                0.1 * jax.random.normal(ks[3], (OUP,)),
                1.0 + 0.1 * jnp.abs(jax.random.normal(ks[4], (OUP,))))
    p["w_dw"] = jax.random.normal(ks[5], (OUP, K, K), jnp.float32) * 0.1    # (C,K,K)
    p["bn1"] = (1.0 + 0.1 * jax.random.normal(ks[6], (OUP,)),
                0.1 * jax.random.normal(ks[7], (OUP,)),
                0.1 * jax.random.normal(ks[8], (OUP,)),
                1.0 + 0.1 * jnp.abs(jax.random.normal(ks[9], (OUP,))))
    p["w_se1"] = jax.random.normal(ks[10], (CSQ, OUP), jnp.float32) * 0.1   # reduce
    p["b_se1"] = 0.1 * jax.random.normal(ks[11], (CSQ,))
    p["w_se2"] = jax.random.normal(ks[12], (OUP, CSQ), jnp.float32) * 0.1   # expand
    p["b_se2"] = 0.1 * jax.random.normal(ks[13], (OUP,))
    p["w_proj"] = jax.random.normal(ks[14], (COUT, OUP), jnp.float32) * 0.1
    kb = jax.random.split(ks[15], 4)
    p["bn2"] = (1.0 + 0.1 * jax.random.normal(kb[0], (COUT,)),
                0.1 * jax.random.normal(kb[1], (COUT,)),
                0.1 * jax.random.normal(kb[2], (COUT,)),
                1.0 + 0.1 * jnp.abs(jax.random.normal(kb[3], (COUT,))))
    return p


# ============================ full forward (Pallas) ==========================

def mbconv_forward(x_nchw, p):
    n, cin, h, w = x_nchw.shape
    hw = h * w
    oup = p["w_exp"].shape[0]
    cout = p["w_proj"].shape[0]
    csq = p["w_se1"].shape[0]

    s0, b0 = fold_bn(*p["bn0"])
    s1, b1 = fold_bn(*p["bn1"])
    s2, b2 = fold_bn(*p["bn2"])

    # Fold the BN scales into the conv weights (host-side, free).
    w_exp_f = p["w_exp"] * s0[:, None]                                # (OUP, CIN)
    w_proj_f = p["w_proj"] * s2[:, None]                              # (COUT, OUP)
    w_dw_f = p["w_dw"].reshape(oup, K * K) * s1[:, None]              # (OUP, K*K)

    # Combined depthwise constant: cmb[tap, c, m] = mask[tap, m] * w_dw_f[c, tap]
    masks = _dw_masks(h, w, K, PAD)                                   # (K*K, 1, HW)
    cmb = masks * jnp.transpose(w_dw_f, (1, 0))[:, :, None]           # (K*K, OUP, HW)

    # Pack the small per-channel vectors into one (OUP, P) tile.
    p_cols = 4 + 2 * csq
    small = jnp.zeros((oup, p_cols), jnp.float32)
    small = small.at[:, 0].set(b0)
    small = small.at[:, 1].set(b1)
    small = small.at[:cout, 2].set(b2)
    small = small.at[:, 3].set(p["b_se2"])
    small = small.at[:, 4:4 + csq].set(jnp.transpose(p["w_se1"], (1, 0)))
    small = small.at[:, 4 + csq:4 + 2 * csq].set(p["w_se2"])

    x3 = x_nchw.reshape(n, cin, hw)                                   # free reshape

    kern = functools.partial(_mbconv_kernel, h=h, w=w, k=K, pad=PAD,
                             csq=csq, cout=cout)
    out = pl.pallas_call(
        kern,
        out_shape=jax.ShapeDtypeStruct((n, cout, hw), x_nchw.dtype),
        grid_spec=pltpu.PrefetchScalarGridSpec(
            num_scalar_prefetch=0,
            grid=(n,),
            in_specs=[
                pl.BlockSpec((1, cin, hw), lambda b: (b, 0, 0)),          # x
                pl.BlockSpec((oup, cin), lambda b: (0, 0)),               # w_exp*s0
                pl.BlockSpec((K * K, oup, hw), lambda b: (0, 0, 0)),      # mask*w_dw*s1
                pl.BlockSpec((cout, oup), lambda b: (0, 0)),              # w_proj*s2
                pl.BlockSpec((oup, p_cols), lambda b: (0, 0)),            # packed smalls
                pl.BlockSpec((1, csq), lambda b: (0, 0)),                 # b_se_reduce
            ],
            out_specs=pl.BlockSpec((1, cout, hw), lambda b: (b, 0, 0)),
        ),
        compiler_params=pltpu.CompilerParams(
            dimension_semantics=("parallel",)),
    )(x3, w_exp_f, cmb, w_proj_f, small, p["b_se1"].reshape(1, csq))
    return out.reshape(n, cout, h, w)


# ============================ pure-JAX reference =============================

def mbconv_reference(x_nchw, p):
    swish = lambda v: v * jax.nn.sigmoid(v)
    x = jnp.transpose(x_nchw, (0, 2, 3, 1))                           # NHWC
    n, h, w, cin = x.shape
    s0, b0 = fold_bn(*p["bn0"])
    s1, b1 = fold_bn(*p["bn1"])
    s2, b2 = fold_bn(*p["bn2"])

    y = swish(jnp.einsum("nhwc,dc->nhwd", x, p["w_exp"]) * s0 + b0)
    yp = jnp.pad(y, ((0, 0), (PAD, PAD), (PAD, PAD), (0, 0)))
    acc = jnp.zeros_like(y)
    for dy in range(K):
        for dx in range(K):
            acc = acc + yp[:, dy:dy + h, dx:dx + w, :] * p["w_dw"][:, dy, dx]
    y = swish(acc * s1 + b1)

    pooled = y.mean(axis=(1, 2))                                      # (N, OUP)
    t = swish(jnp.sum(pooled[:, :, None] * p["w_se1"].T[None], axis=1) + p["b_se1"])
    gate = jax.nn.sigmoid(jnp.sum(t[:, None, :] * p["w_se2"][None], axis=2) + p["b_se2"])
    y = y * gate[:, None, None, :]

    out = jnp.einsum("nhwc,dc->nhwd", y, p["w_proj"]) * s2 + b2
    out = out + x
    return jnp.transpose(out, (0, 3, 1, 2))


# ============================ main ===========================================

if __name__ == "__main__":
    key = jax.random.PRNGKey(0)
    kx, kp = jax.random.split(key)
    x = jax.random.normal(kx, (N, CIN, H, W), jnp.float32)
    params = init_params(kp)

    out = jax.jit(mbconv_forward)(x, params)
    out = jax.block_until_ready(out)

    ref = mbconv_reference(x, params)
    assert out.shape == (N, COUT, H, W), out.shape
    err = float(jnp.max(jnp.abs(out - ref)))
    assert jnp.allclose(out, ref, rtol=1e-4, atol=1e-4), err

    print("KERNEL_OK")
</pallas_src>

<mosaic_0001>
module attributes {stable_mosaic.version = 11 : i64} {
  func.func @_mbconv_kernel(%arg0: i32, %arg1: memref<1x8x256xf32, #tpu.memory_space<vmem>>, %arg2: memref<32x8xf32, #tpu.memory_space<vmem>>, %arg3: memref<9x32x256xf32, #tpu.memory_space<vmem>>, %arg4: memref<8x32xf32, #tpu.memory_space<vmem>>, %arg5: memref<32x8xf32, #tpu.memory_space<vmem>>, %arg6: memref<1x2xf32, #tpu.memory_space<vmem>>, %arg7: memref<1x8x256xf32, #tpu.memory_space<vmem>>) attributes {dimension_semantics = [#tpu.dimension_semantics<parallel>], iteration_bounds = array<i64: 2>, scalar_prefetch = 0 : i64, scratch_operands = 0 : i64, tpu.core_type = #tpu.core_type<tc>, window_params = [{transform_indices = @transform_0, window_bounds = array<i64: 1, 8, 256>}, {pipeline_mode = #tpu.pipeline_mode<synchronous>, transform_indices = @transform_1, window_bounds = array<i64: 32, 8>}, {pipeline_mode = #tpu.pipeline_mode<synchronous>, transform_indices = @transform_2, window_bounds = array<i64: 9, 32, 256>}, {pipeline_mode = #tpu.pipeline_mode<synchronous>, transform_indices = @transform_3, window_bounds = array<i64: 8, 32>}, {pipeline_mode = #tpu.pipeline_mode<synchronous>, transform_indices = @transform_4, window_bounds = array<i64: 32, 8>}, {pipeline_mode = #tpu.pipeline_mode<synchronous>, transform_indices = @transform_5, window_bounds = array<i64: 1, 2>}, {transform_indices = @transform_6, window_bounds = array<i64: 1, 8, 256>}]} {
    %c0 = arith.constant 0 : index
    %c0_0 = arith.constant 0 : index
    %c0_1 = arith.constant 0 : index
    %0 = vector.load %arg1[%c0, %c0_0, %c0_1] : memref<1x8x256xf32, #tpu.memory_space<vmem>>, vector<1x8x256xf32>
    %1 = vector.shape_cast %0 : vector<1x8x256xf32> to vector<8x256xf32>
    %c0_2 = arith.constant 0 : index
    %c0_3 = arith.constant 0 : index
    %2 = vector.load %arg5[%c0_2, %c0_3] : memref<32x8xf32, #tpu.memory_space<vmem>>, vector<32x1xf32>
    %c0_4 = arith.constant 0 : index
    %c1 = arith.constant 1 : index
    %3 = vector.load %arg5[%c0_4, %c1] : memref<32x8xf32, #tpu.memory_space<vmem>>, vector<32x1xf32>
    %c0_5 = arith.constant 0 : index
    %c2 = arith.constant 2 : index
    %4 = vector.load %arg5[%c0_5, %c2] : memref<32x8xf32, #tpu.memory_space<vmem>>, vector<8x1xf32>
    %c0_6 = arith.constant 0 : index
    %c3 = arith.constant 3 : index
    %5 = vector.load %arg5[%c0_6, %c3] : memref<32x8xf32, #tpu.memory_space<vmem>>, vector<32x1xf32>
    %c0_7 = arith.constant 0 : index
    %c4 = arith.constant 4 : index
    %6 = vector.load %arg5[%c0_7, %c4] : memref<32x8xf32, #tpu.memory_space<vmem>>, vector<32x2xf32>
    %c0_8 = arith.constant 0 : index
    %c6 = arith.constant 6 : index
    %7 = vector.load %arg5[%c0_8, %c6] : memref<32x8xf32, #tpu.memory_space<vmem>>, vector<32x2xf32>
    %c0_9 = arith.constant 0 : index
    %c0_10 = arith.constant 0 : index
    %8 = vector.load %arg2[%c0_9, %c0_10] : memref<32x8xf32, #tpu.memory_space<vmem>>, vector<32x8xf32>
    %cst = arith.constant dense<0.000000e+00> : vector<32x256xf32>
    %9 = tpu.matmul %8, %1, %cst {dimension_numbers = #tpu.dot_dimension_numbers<[1], [0], [0], [1], [0, 0, 1, 1], [], []>} : vector<32x8xf32>, vector<8x256xf32>, vector<32x256xf32> -> vector<32x256xf32>
    %10 = vector.broadcast %2 : vector<32x1xf32> to vector<32x256xf32>
    %11 = arith.addf %9, %10 : vector<32x256xf32>
    %12 = arith.negf %11 : vector<32x256xf32>
    %13 = math.exp %12 : vector<32x256xf32>
    %cst_11 = arith.constant 1.000000e+00 : f32
    %14 = vector.broadcast %cst_11 : f32 to vector<32x256xf32>
    %15 = arith.addf %14, %13 : vector<32x256xf32>
    %16 = arith.divf %14, %15 : vector<32x256xf32>
    %17 = arith.mulf %11, %16 : vector<32x256xf32>
    %c4_12 = arith.constant 4 : index
    %c0_13 = arith.constant 0 : index
    %c0_14 = arith.constant 0 : index
    %18 = vector.load %arg3[%c4_12, %c0_13, %c0_14] : memref<9x32x256xf32, #tpu.memory_space<vmem>>, vector<1x32x256xf32>
    %19 = vector.shape_cast %18 : vector<1x32x256xf32> to vector<32x256xf32>
    %20 = arith.mulf %17, %19 : vector<32x256xf32>
    %c17_i32 = arith.constant 17 : i32
    %21 = tpu.dynamic_rotate %17 by %c17_i32 dim 1 : vector<32x256xf32>, i32 -> vector<32x256xf32>
    %c0_15 = arith.constant 0 : index
    %c0_16 = arith.constant 0 : index
    %c0_17 = arith.constant 0 : index
    %22 = vector.load %arg3[%c0_15, %c0_16, %c0_17] : memref<9x32x256xf32, #tpu.memory_space<vmem>>, vector<1x32x256xf32>
    %23 = vector.shape_cast %22 : vector<1x32x256xf32> to vector<32x256xf32>
    %24 = arith.mulf %21, %23 : vector<32x256xf32>
    %25 = arith.addf %20, %24 : vector<32x256xf32>
    %c16_i32 = arith.constant 16 : i32
    %26 = tpu.dynamic_rotate %17 by %c16_i32 dim 1 : vector<32x256xf32>, i32 -> vector<32x256xf32>
    %c1_18 = arith.constant 1 : index
    %c0_19 = arith.constant 0 : index
    %c0_20 = arith.constant 0 : index
    %27 = vector.load %arg3[%c1_18, %c0_19, %c0_20] : memref<9x32x256xf32, #tpu.memory_space<vmem>>, vector<1x32x256xf32>
    %28 = vector.shape_cast %27 : vector<1x32x256xf32> to vector<32x256xf32>
    %29 = arith.mulf %26, %28 : vector<32x256xf32>
    %30 = arith.addf %25, %29 : vector<32x256xf32>
    %c15_i32 = arith.constant 15 : i32
    %31 = tpu.dynamic_rotate %17 by %c15_i32 dim 1 : vector<32x256xf32>, i32 -> vector<32x256xf32>
    %c2_21 = arith.constant 2 : index
    %c0_22 = arith.constant 0 : index
    %c0_23 = arith.constant 0 : index
    %32 = vector.load %arg3[%c2_21, %c0_22, %c0_23] : memref<9x32x256xf32, #tpu.memory_space<vmem>>, vector<1x32x256xf32>
    %33 = vector.shape_cast %32 : vector<1x32x256xf32> to vector<32x256xf32>
    %34 = arith.mulf %31, %33 : vector<32x256xf32>
    %35 = arith.addf %30, %34 : vector<32x256xf32>
    %c1_i32 = arith.constant 1 : i32
    %36 = tpu.dynamic_rotate %17 by %c1_i32 dim 1 : vector<32x256xf32>, i32 -> vector<32x256xf32>
    %c3_24 = arith.constant 3 : index
    %c0_25 = arith.constant 0 : index
    %c0_26 = arith.constant 0 : index
    %37 = vector.load %arg3[%c3_24, %c0_25, %c0_26] : memref<9x32x256xf32, #tpu.memory_space<vmem>>, vector<1x32x256xf32>
    %38 = vector.shape_cast %37 : vector<1x32x256xf32> to vector<32x256xf32>
    %39 = arith.mulf %36, %38 : vector<32x256xf32>
    %40 = arith.addf %35, %39 : vector<32x256xf32>
    %c255_i32 = arith.constant 255 : i32
    %41 = tpu.dynamic_rotate %17 by %c255_i32 dim 1 : vector<32x256xf32>, i32 -> vector<32x256xf32>
    %c5 = arith.constant 5 : index
    %c0_27 = arith.constant 0 : index
    %c0_28 = arith.constant 0 : index
    %42 = vector.load %arg3[%c5, %c0_27, %c0_28] : memref<9x32x256xf32, #tpu.memory_space<vmem>>, vector<1x32x256xf32>
    %43 = vector.shape_cast %42 : vector<1x32x256xf32> to vector<32x256xf32>
    %44 = arith.mulf %41, %43 : vector<32x256xf32>
    %45 = arith.addf %40, %44 : vector<32x256xf32>
    %c241_i32 = arith.constant 241 : i32
    %46 = tpu.dynamic_rotate %17 by %c241_i32 dim 1 : vector<32x256xf32>, i32 -> vector<32x256xf32>
    %c6_29 = arith.constant 6 : index
    %c0_30 = arith.constant 0 : index
    %c0_31 = arith.constant 0 : index
    %47 = vector.load %arg3[%c6_29, %c0_30, %c0_31] : memref<9x32x256xf32, #tpu.memory_space<vmem>>, vector<1x32x256xf32>
    %48 = vector.shape_cast %47 : vector<1x32x256xf32> to vector<32x256xf32>
    %49 = arith.mulf %46, %48 : vector<32x256xf32>
    %50 = arith.addf %45, %49 : vector<32x256xf32>
    %c240_i32 = arith.constant 240 : i32
    %51 = tpu.dynamic_rotate %17 by %c240_i32 dim 1 : vector<32x256xf32>, i32 -> vector<32x256xf32>
    %c7 = arith.constant 7 : index
    %c0_32 = arith.constant 0 : index
    %c0_33 = arith.constant 0 : index
    %52 = vector.load %arg3[%c7, %c0_32, %c0_33] : memref<9x32x256xf32, #tpu.memory_space<vmem>>, vector<1x32x256xf32>
    %53 = vector.shape_cast %52 : vector<1x32x256xf32> to vector<32x256xf32>
    %54 = arith.mulf %51, %53 : vector<32x256xf32>
    %55 = arith.addf %50, %54 : vector<32x256xf32>
    %c239_i32 = arith.constant 239 : i32
    %56 = tpu.dynamic_rotate %17 by %c239_i32 dim 1 : vector<32x256xf32>, i32 -> vector<32x256xf32>
    %c8 = arith.constant 8 : index
    %c0_34 = arith.constant 0 : index
    %c0_35 = arith.constant 0 : index
    %57 = vector.load %arg3[%c8, %c0_34, %c0_35] : memref<9x32x256xf32, #tpu.memory_space<vmem>>, vector<1x32x256xf32>
    %58 = vector.shape_cast %57 : vector<1x32x256xf32> to vector<32x256xf32>
    %59 = arith.mulf %56, %58 : vector<32x256xf32>
    %60 = arith.addf %55, %59 : vector<32x256xf32>
    %61 = vector.broadcast %3 : vector<32x1xf32> to vector<32x256xf32>
    %62 = arith.addf %60, %61 : vector<32x256xf32>
    %63 = arith.negf %62 : vector<32x256xf32>
    %64 = math.exp %63 : vector<32x256xf32>
    %cst_36 = arith.constant 1.000000e+00 : f32
    %65 = vector.broadcast %cst_36 : f32 to vector<32x256xf32>
    %66 = arith.addf %65, %64 : vector<32x256xf32>
    %67 = arith.divf %65, %66 : vector<32x256xf32>
    %68 = arith.mulf %62, %67 : vector<32x256xf32>
    %cst_37 = arith.constant dense<0.000000e+00> : vector<32xf32>
    %69 = vector.multi_reduction <add>, %68, %cst_37 [1] : vector<32x256xf32> to vector<32xf32>
    %70 = vector.shape_cast %69 : vector<32xf32> to vector<32x1xf32>
    %cst_38 = arith.constant 2.560000e+02 : f32
    %71 = vector.broadcast %cst_38 : f32 to vector<32x1xf32>
    %72 = arith.divf %70, %71 : vector<32x1xf32>
    %73 = vector.broadcast %72 : vector<32x1xf32> to vector<32x2xf32>
    %74 = arith.mulf %73, %6 : vector<32x2xf32>
    %cst_39 = arith.constant dense<0.000000e+00> : vector<2xf32>
    %75 = vector.multi_reduction <add>, %74, %cst_39 [0] : vector<32x2xf32> to vector<2xf32>
    %76 = vector.shape_cast %75 : vector<2xf32> to vector<1x2xf32>
    %c0_40 = arith.constant 0 : index
    %c0_41 = arith.constant 0 : index
    %77 = vector.load %arg6[%c0_40, %c0_41] : memref<1x2xf32, #tpu.memory_space<vmem>>, vector<1x2xf32>
    %78 = arith.addf %76, %77 : vector<1x2xf32>
    %79 = arith.negf %78 : vector<1x2xf32>
    %80 = math.exp %79 : vector<1x2xf32>
    %cst_42 = arith.constant 1.000000e+00 : f32
    %81 = vector.broadcast %cst_42 : f32 to vector<1x2xf32>
    %82 = arith.addf %81, %80 : vector<1x2xf32>
    %83 = arith.divf %81, %82 : vector<1x2xf32>
    %84 = arith.mulf %78, %83 : vector<1x2xf32>
    %85 = vector.broadcast %84 : vector<1x2xf32> to vector<32x2xf32>
    %86 = arith.mulf %85, %7 : vector<32x2xf32>
    %cst_43 = arith.constant dense<0.000000e+00> : vector<32xf32>
    %87 = vector.multi_reduction <add>, %86, %cst_43 [1] : vector<32x2xf32> to vector<32xf32>
    %88 = vector.shape_cast %87 : vector<32xf32> to vector<32x1xf32>
    %89 = arith.addf %88, %5 : vector<32x1xf32>
    %90 = arith.negf %89 : vector<32x1xf32>
    %91 = math.exp %90 : vector<32x1xf32>
    %cst_44 = arith.constant 1.000000e+00 : f32
    %92 = vector.broadcast %cst_44 : f32 to vector<32x1xf32>
    %93 = arith.addf %92, %91 : vector<32x1xf32>
    %94 = arith.divf %92, %93 : vector<32x1xf32>
    %95 = vector.broadcast %94 : vector<32x1xf32> to vector<32x256xf32>
    %96 = arith.mulf %68, %95 : vector<32x256xf32>
    %c0_45 = arith.constant 0 : index
    %c0_46 = arith.constant 0 : index
    %97 = vector.load %arg4[%c0_45, %c0_46] : memref<8x32xf32, #tpu.memory_space<vmem>>, vector<8x32xf32>
    %cst_47 = arith.constant dense<0.000000e+00> : vector<8x256xf32>
    %98 = tpu.matmul %97, %96, %cst_47 {dimension_numbers = #tpu.dot_dimension_numbers<[1], [0], [0], [1], [0, 0, 1, 1], [], []>} : vector<8x32xf32>, vector<32x256xf32>, vector<8x256xf32> -> vector<8x256xf32>
    %99 = vector.broadcast %4 : vector<8x1xf32> to vector<8x256xf32>
    %100 = arith.addf %98, %99 : vector<8x256xf32>
    %101 = arith.addf %100, %1 : vector<8x256xf32>
    %c0_48 = arith.constant 0 : index
    %c0_49 = arith.constant 0 : index
    %c0_50 = arith.constant 0 : index
    %102 = vector.load %arg7[%c0_48, %c0_49, %c0_50] : memref<1x8x256xf32, #tpu.memory_space<vmem>>, vector<1x8x256xf32>
    %103 = vector.shape_cast %102 : vector<1x8x256xf32> to vector<8x256xf32>
    %104 = vector.shape_cast %101 : vector<8x256xf32> to vector<1x8x256xf32>
    tpu.vector_store %arg7[%c0_48, %c0_49, %c0_50], %104 {strides = array<i32>} : memref<1x8x256xf32, #tpu.memory_space<vmem>>, vector<1x8x256xf32>,
    return
  }
  func.func @transform_0(%arg0: i32) -> (i32, i32, i32) {
    %c0_i32 = arith.constant 0 : i32
    %c0_i32_0 = arith.constant 0 : i32
    %c0_i32_1 = arith.constant 0 : i32
    return %arg0, %c0_i32, %c0_i32_0 : i32, i32, i32
  }
  func.func @transform_1(%arg0: i32) -> (i32, i32) {
    %c0_i32 = arith.constant 0 : i32
    %c0_i32_0 = arith.constant 0 : i32
    %c0_i32_1 = arith.constant 0 : i32
    return %c0_i32, %c0_i32_0 : i32, i32
  }
  func.func @transform_2(%arg0: i32) -> (i32, i32, i32) {
    %c0_i32 = arith.constant 0 : i32
    %c0_i32_0 = arith.constant 0 : i32
    %c0_i32_1 = arith.constant 0 : i32
    %c0_i32_2 = arith.constant 0 : i32
    return %c0_i32, %c0_i32_0, %c0_i32_1 : i32, i32, i32
  }
  func.func @transform_3(%arg0: i32) -> (i32, i32) {
    %c0_i32 = arith.constant 0 : i32
    %c0_i32_0 = arith.constant 0 : i32
    %c0_i32_1 = arith.constant 0 : i32
    return %c0_i32, %c0_i32_0 : i32, i32
  }
  func.func @transform_4(%arg0: i32) -> (i32, i32) {
    %c0_i32 = arith.constant 0 : i32
    %c0_i32_0 = arith.constant 0 : i32
    %c0_i32_1 = arith.constant 0 : i32
    return %c0_i32, %c0_i32_0 : i32, i32
  }
  func.func @transform_5(%arg0: i32) -> (i32, i32) {
    %c0_i32 = arith.constant 0 : i32
    %c0_i32_0 = arith.constant 0 : i32
    %c0_i32_1 = arith.constant 0 : i32
    return %c0_i32, %c0_i32_0 : i32, i32
  }
  func.func @transform_6(%arg0: i32) -> (i32, i32, i32) {
    %c0_i32 = arith.constant 0 : i32
    %c0_i32_0 = arith.constant 0 : i32
    %c0_i32_1 = arith.constant 0 : i32
    return %arg0, %c0_i32, %c0_i32_0 : i32, i32, i32
  }
}

</mosaic_0001>

<llo_original>
// kernel: mbconv_forward.1
$region0: #{mbconv_forward.1}
  #allocation0 [shape = 'u32[]', space=smem, size = 0x4, offset = 0x4, fixed_abs, tag = 'smem constant byte address 0x4 - core index']
  #allocation1 [shape = 'u32[72,128]{1,0:T(1,128)}', space=vmem, size = 0x9000, scoped, tag = 'internal scratch']
  %s0 = inlined_call_operand.vmem [shape: f32[2,8,256], index: 0, kind: input, shape index: {}]
  %s1 = inlined_call_operand.vmem [shape: f32[32,8], index: 1, kind: input, shape index: {}]
  %s2 = inlined_call_operand.vmem [shape: f32[9,32,256], index: 2, kind: input, shape index: {}]
  %s3 = inlined_call_operand.vmem [shape: f32[8,32], index: 3, kind: input, shape index: {}]
  %s4 = inlined_call_operand.vmem [shape: f32[32,8], index: 4, kind: input, shape index: {}]
  %s5 = inlined_call_operand.vmem [shape: f32[1,2], index: 5, kind: input, shape index: {}]
  %s6 = inlined_call_operand.vmem [shape: f32[2,8,256], index: 6, kind: output, shape index: {}]
  %s7 = sld [smem:[#allocation0]]
  $region57: #{mbconv_forward.1} parent=0
    _
  %s9 = ssub.s32 1, %s7
  %s10 = scalar_select 0, %s9, %s7
  loop: start=0, step=1, limit=4
  $region2: #{mbconv_forward.1} parent=0 // loop_pre_header
    _
  $region3: #{mbconv_forward.1} parent=0 // loop_header
    %s12 = sphi 0, %s16
    %p13 = scmp.ge.s32.totalorder %s12, 4
    %s22 = sphi 0, %s24
    %s25 = sphi 0, %s22
    %s26 = sphi 0, %s25
    %s42 = sphi 0, %s26
    %s46 = sphi 0, %s46
    %s48 = sphi 0, %s46
    %s49 = sphi 0, %s48
    %s63 = sphi 0, %s49
    %s67 = sphi 0, %s67
    %s69 = sphi 0, %s67
    %s70 = sphi 0, %s69
    %s84 = sphi 0, %s70
    %s88 = sphi 0, %s88
    %s90 = sphi 0, %s88
    %s91 = sphi 0, %s90
    %s105 = sphi 0, %s91
    %s109 = sphi 0, %s109
    %s111 = sphi 0, %s109
    %s112 = sphi 0, %s111
    %s126 = sphi 0, %s112
    %s130 = sphi 0, %s130
    %s132 = sphi 0, %s130
    %s133 = sphi 0, %s132
    %s147 = sphi 0, %s133
    %s153 = sphi 0, %s155
    %s156 = sphi 0, %s153
    %s157 = sphi 0, %s156
    %s173 = sphi 0, %s157
  $region4: #{mbconv_forward.1} parent=0 // loop_header_branch
    %15 = sbr.rel (%p13) target = $region8
  $region5: #{mbconv_forward.1} parent=0 // loop_body
    %s17 = ssub.s32 %s12, 1
    %s18 = ssub.s32 %s12, 2
    %s19 = sadd.s32 %s12, 1
    %s20 = ssub.s32 %s12, %s19
    %p21 = scmp.eq.s32.totalorder %s20, 0
    %s23 = sadd.s32 %s22, 1
    %s24 = scalar_select %p21, %s22, %s23
    %p27 = pneg %p21
    %p28 = scmp.eq.s32.totalorder %s12, 1
    %p29 = por %p27, %p28
    %p30 = scmp.ne.s32.totalorder %s22, %s25
    %p31 = scmp.eq.s32.totalorder %s12, 0
    %p32 = por %p30, %p31
    %p33 = scmp.ne.s32.totalorder %s22, %s25
    %p34 = scmp.eq.s32.totalorder %s17, 1
    %p35 = por %p33, %p34
    %p36 = scmp.ne.s32.totalorder %s25, %s26
    %p37 = scmp.eq.s32.totalorder %s17, 0
    %p38 = por %p36, %p37
    %p39 = scmp.ne.s32.totalorder %s25, %s26
    %p40 = scmp.eq.s32.totalorder %s18, 1
    %p41 = por %p39, %p40
    %p43 = scmp.ne.s32.totalorder %s26, %s42
    %p44 = scmp.eq.s32.totalorder %s18, 0
    %p45 = por %p43, %p44
    %s47 = sadd.s32 %s46, 1
    %p50 = scmp.eq.s32.totalorder %s12, 1
    %p51 = scmp.ne.s32.totalorder %s46, %s48
    %p52 = scmp.eq.s32.totalorder %s12, 0
    %p53 = por %p51, %p52
    %p54 = scmp.ne.s32.totalorder %s46, %s48
    %p55 = scmp.eq.s32.totalorder %s17, 1
    %p56 = por %p54, %p55
    %p57 = scmp.ne.s32.totalorder %s48, %s49
    %p58 = scmp.eq.s32.totalorder %s17, 0
    %p59 = por %p57, %p58
    %p60 = scmp.ne.s32.totalorder %s48, %s49
    %p61 = scmp.eq.s32.totalorder %s18, 1
    %p62 = por %p60, %p61
    %p64 = scmp.ne.s32.totalorder %s49, %s63
    %p65 = scmp.eq.s32.totalorder %s18, 0
    %p66 = por %p64, %p65
    %s68 = sadd.s32 %s67, 1
    %p71 = scmp.eq.s32.totalorder %s12, 1
    %p72 = scmp.ne.s32.totalorder %s67, %s69
    %p73 = scmp.eq.s32.totalorder %s12, 0
    %p74 = por %p72, %p73
    %p75 = scmp.ne.s32.totalorder %s67, %s69
    %p76 = scmp.eq.s32.totalorder %s17, 1
    %p77 = por %p75, %p76
    %p78 = scmp.ne.s32.totalorder %s69, %s70
    %p79 = scmp.eq.s32.totalorder %s17, 0
    %p80 = por %p78, %p79
    %p81 = scmp.ne.s32.totalorder %s69, %s70
    %p82 = scmp.eq.s32.totalorder %s18, 1
    %p83 = por %p81, %p82
    %p85 = scmp.ne.s32.totalorder %s70, %s84
    %p86 = scmp.eq.s32.totalorder %s18, 0
    %p87 = por %p85, %p86
    %s89 = sadd.s32 %s88, 1
    %p92 = scmp.eq.s32.totalorder %s12, 1
    %p93 = scmp.ne.s32.totalorder %s88, %s90
    %p94 = scmp.eq.s32.totalorder %s12, 0
    %p95 = por %p93, %p94
    %p96 = scmp.ne.s32.totalorder %s88, %s90
    %p97 = scmp.eq.s32.totalorder %s17, 1
    %p98 = por %p96, %p97
    %p99 = scmp.ne.s32.totalorder %s90, %s91
    %p100 = scmp.eq.s32.totalorder %s17, 0
    %p101 = por %p99, %p100
    %p102 = scmp.ne.s32.totalorder %s90, %s91
    %p103 = scmp.eq.s32.totalorder %s18, 1
    %p104 = por %p102, %p103
    %p106 = scmp.ne.s32.totalorder %s91, %s105
    %p107 = scmp.eq.s32.totalorder %s18, 0
    %p108 = por %p106, %p107
    %s110 = sadd.s32 %s109, 1
    %p113 = scmp.eq.s32.totalorder %s12, 1
    %p114 = scmp.ne.s32.totalorder %s109, %s111
    %p115 = scmp.eq.s32.totalorder %s12, 0
    %p116 = por %p114, %p115
    %p117 = scmp.ne.s32.totalorder %s109, %s111
    %p118 = scmp.eq.s32.totalorder %s17, 1
    %p119 = por %p117, %p118
    %p120 = scmp.ne.s32.totalorder %s111, %s112
    %p121 = scmp.eq.s32.totalorder %s17, 0
    %p122 = por %p120, %p121
    %p123 = scmp.ne.s32.totalorder %s111, %s112
    %p124 = scmp.eq.s32.totalorder %s18, 1
    %p125 = por %p123, %p124
    %p127 = scmp.ne.s32.totalorder %s112, %s126
    %p128 = scmp.eq.s32.totalorder %s18, 0
    %p129 = por %p127, %p128
    %s131 = sadd.s32 %s130, 1
    %p134 = scmp.eq.s32.totalorder %s12, 1
    %p135 = scmp.ne.s32.totalorder %s130, %s132
    %p136 = scmp.eq.s32.totalorder %s12, 0
    %p137 = por %p135, %p136
    %p138 = scmp.ne.s32.totalorder %s130, %s132
    %p139 = scmp.eq.s32.totalorder %s17, 1
    %p140 = por %p138, %p139
    %p141 = scmp.ne.s32.totalorder %s132, %s133
    %p142 = scmp.eq.s32.totalorder %s17, 0
    %p143 = por %p141, %p142
    %p144 = scmp.ne.s32.totalorder %s132, %s133
    %p145 = scmp.eq.s32.totalorder %s18, 1
    %p146 = por %p144, %p145
    %p148 = scmp.ne.s32.totalorder %s133, %s147
    %p149 = scmp.eq.s32.totalorder %s18, 0
    %p150 = por %p148, %p149
    %s151 = ssub.s32 %s12, %s19
    %p152 = scmp.eq.s32.totalorder %s151, 0
    %s154 = sadd.s32 %s153, 1
    %s155 = scalar_select %p152, %s153, %s154
    %p158 = pneg %p152
    %p159 = scmp.eq.s32.totalorder %s12, 1
    %p160 = por %p158, %p159
    %p161 = scmp.ne.s32.totalorder %s153, %s156
    %p162 = scmp.eq.s32.totalorder %s12, 0
    %p163 = por %p161, %p162
    %p164 = scmp.ne.s32.totalorder %s153, %s156
    %p165 = scmp.eq.s32.totalorder %s17, 1
    %p166 = por %p164, %p165
    %p167 = scmp.ne.s32.totalorder %s156, %s157
    %p168 = scmp.eq.s32.totalorder %s17, 0
    %p169 = por %p167, %p168
    %p170 = scmp.ne.s32.totalorder %s156, %s157
    %p171 = scmp.eq.s32.totalorder %s18, 1
    %p172 = por %p170, %p171
    %p174 = scmp.ne.s32.totalorder %s157, %s173
    %p175 = scmp.eq.s32.totalorder %s18, 0
    %p176 = por %p174, %p175
    %p177 = scmp.le.s32.totalorder 1, %s12
    %p178 = scmp.lt.s32.totalorder %s12, 3
    %p179 = pnand %p177, %p178
    %p180 = pneg %p179
    // Predicated region
    $region9: #{mbconv_forward.1} parent=5 // pred_check
      _
    $region10: #{mbconv_forward.1} parent=5 // pred_check_branch
      %182 = sbr.rel (%p179) target = $region12
    $region11: #{mbconv_forward.1} parent=5 // pred_region
      %s183 = ssub.s32 %s12, 1
      // Predicated region
      $region13: #{mbconv_forward.1} parent=11 // pred_check
        %p184 = pneg %p59
      $region14: #{mbconv_forward.1} parent=11 // pred_check_branch
        %186 = sbr.rel (%p184) target = $region16
      $region15: #{mbconv_forward.1} parent=11 // pred_region
        _
      $region16: #{mbconv_forward.1} parent=11 // pred_fallthru
        _
      // Predicated region
      $region17: #{mbconv_forward.1} parent=11 // pred_check
        %p187 = pneg %p80
      $region18: #{mbconv_forward.1} parent=11 // pred_check_branch
        %189 = sbr.rel (%p187) target = $region20
      $region19: #{mbconv_forward.1} parent=11 // pred_region
        _
      $region20: #{mbconv_forward.1} parent=11 // pred_fallthru
        _
      // Predicated region
      $region21: #{mbconv_forward.1} parent=11 // pred_check
        %p190 = pneg %p101
      $region22: #{mbconv_forward.1} parent=11 // pred_check_branch
        %192 = sbr.rel (%p190) target = $region24
      $region23: #{mbconv_forward.1} parent=11 // pred_region
        _
      $region24: #{mbconv_forward.1} parent=11 // pred_fallthru
        _
      // Predicated region
      $region25: #{mbconv_forward.1} parent=11 // pred_check
        %p193 = pneg %p122
      $region26: #{mbconv_forward.1} parent=11 // pred_check_branch
        %195 = sbr.rel (%p193) target = $region28
      $region27: #{mbconv_forward.1} parent=11 // pred_region
        _
      $region28: #{mbconv_forward.1} parent=11 // pred_fallthru
        _
      // Predicated region
      $region29: #{mbconv_forward.1} parent=11 // pred_check
        %p196 = pneg %p143
      $region30: #{mbconv_forward.1} parent=11 // pred_check_branch
        %198 = sbr.rel (%p196) target = $region32
      $region31: #{mbconv_forward.1} parent=11 // pred_region
        _
      $region32: #{mbconv_forward.1} parent=11 // pred_fallthru
        _
    $region12: #{mbconv_forward.1} parent=5 // pred_fallthru
      _
    %p199 = scmp.lt.s32.totalorder %s12, 2
    // Predicated region
    $region33: #{mbconv_forward.1} parent=5 // pred_check
      %p200 = pneg %p199
    $region34: #{mbconv_forward.1} parent=5 // pred_check_branch
      %202 = sbr.rel (%p200) target = $region36
    $region35: #{mbconv_forward.1} parent=5 // pred_region
      // Predicated region
      $region37: #{mbconv_forward.1} parent=35 // pred_check
        %p203 = pneg %p32
      $region38: #{mbconv_forward.1} parent=35 // pred_check_branch
        %205 = sbr.rel (%p203) target = $region40
      $region39: #{mbconv_forward.1} parent=35 // pred_region
        %p206 = scmp.lt.s32.totalorder %s12, 1
        %s207 = scalar_select %p206, %s12, 1
        %s208 = smul.addr %s207, 2
        %s209 = smul.addr %s208, 8
        %s210 = scalar_lea.vmem %s0, %s209
      $region40: #{mbconv_forward.1} parent=35 // pred_fallthru
        _
    $region36: #{mbconv_forward.1} parent=5 // pred_fallthru
      _
    %p211 = scmp.le.s32.totalorder 1, %s12
    %p212 = scmp.lt.s32.totalorder %s12, 3
    %p213 = pnand %p211, %p212
    %p214 = pneg %p213
    // Predicated region
    $region41: #{mbconv_forward.1} parent=5 // pred_check
      _
    $region42: #{mbconv_forward.1} parent=5 // pred_check_branch
      %216 = sbr.rel (%p213) target = $region44
    $region43: #{mbconv_forward.1} parent=5 // pred_region
      %s217 = ssub.s32 %s12, 1
      %p218 = scmp.lt.s32.totalorder %s17, 1
      %s219 = scalar_select %p218, %s17, 1
      %s220 = smul.addr %s219, 2
      %s221 = smul.addr %s220, 8
      %s222 = scalar_lea.vmem %s0, %s221
      %p223 = pneg %p38
      %p224 = pneg %p35
      %p225 = pneg %p59
      %p226 = pneg %p56
      %p227 = pneg %p80
      %p228 = pneg %p77
      %p229 = pneg %p101
      %p230 = pneg %p98
      %p231 = pneg %p122
      %p232 = pneg %p119
      %p233 = pneg %p143
      %p234 = pneg %p140
      %p235 = pneg %p169
      %p236 = pneg %p166
      %p237 = scmp.lt.s32.totalorder %s17, 1
      %s238 = scalar_select %p237, %s17, 1
      %s239 = smul.addr %s238, 2
      %s240 = smul.addr %s239, 8
      %s241 = scalar_lea.vmem %s6, %s240
      %p242 = scmp.lt.s32.totalorder %s17, 1
      %s243 = scalar_select %p242, %s17, 1
      %s244 = smul.addr %s243, 2
      %s245 = smul.addr %s244, 8
      %s246 = scalar_lea.vmem %s0, %s245
      %p247 = scmp.lt.s32.totalorder %s17, 1
      %s248 = scalar_select %p247, %s17, 1
      %s249 = smul.addr %s248, 2
      %s250 = smul.addr %s249, 8
      %s251 = scalar_lea.vmem %s6, %s250
      %v252 = vld [vmem:[%s246] sm:$0xff]
      %v253 = vld [vmem:[%s246 + $0x8] sm:$0xff]
      %v254 = vld [vmem:[%s4] sm:$0xff]
      %v255 = vld [vmem:[%s4 + $0x8] sm:$0xff]
      %v256 = vld [vmem:[%s4 + $0x10] sm:$0xff]
      %v257 = vld [vmem:[%s4 + $0x18] sm:$0xff]
      %v258 = vld [vmem:[%s1] sm:$0xff]
      %v259 = vld [vmem:[%s1 + $0x8] sm:$0xff]
      %v260 = vld [vmem:[%s1 + $0x10] sm:$0xff]
      %v261 = vld [vmem:[%s1 + $0x18] sm:$0xff]
      %263 = vset.pattern.permute.xlu0 0
      %264 = vperm.xlu0 %263, %v254
      %v265 = vpop.permute.xlu0 %264
      %268 = vset.pattern.permute.xlu0 0
      %269 = vperm.xlu0 %268, %v255
      %v270 = vpop.permute.xlu0 %269
      %273 = vset.pattern.permute.xlu0 0
      %274 = vperm.xlu0 %273, %v256
      %v275 = vpop.permute.xlu0 %274
      %278 = vset.pattern.permute.xlu0 0
      %279 = vperm.xlu0 %278, %v257
      %v280 = vpop.permute.xlu0 %279
      %vm282 = vcmask 64512
      %v284 = vsel %vm282, %v258, 0
      %v287 = vsel %vm282, %v259, 0
      %v290 = vsel %vm282, %v260, 0
      %v293 = vsel %vm282, %v261, 0
      %295 = vmatpush.msra.mxu0 0.0
      %296 = vmatpush.msra.mxu0 0.0
      %297 = vmatpush.msra.mxu0 0.0
      %298 = vmatpush.msra.mxu0 0.0
      %299 = vmatpush.msra.mxu0 0.0
      %300 = vmatpush.msra.mxu0 0.0
      %301 = vmatpush.msra.mxu0 0.0
      %302 = vmatpush.msra.mxu0 0.0
      %303 = vmatpush.msra.mxu0 0.0
      %304 = vmatpush.msra.mxu0 0.0
      %305 = vmatpush.msra.mxu0 0.0
      %306 = vmatpush.msra.mxu0 0.0
      %307 = vmatpush.msra.mxu0 0.0
      %308 = vmatpush.msra.mxu0 0.0
      %309 = vmatpush.msra.mxu0 0.0
      %310 = vmatpush.msra.mxu0 %v252
      %311 = vmatmul.f32.gmra.mxu0 %v284
      %v312 = vpop.f32.mrf.mxu0
      %v313 = vadd.f32 %v265, %v312
      %314 = vmatmul.f32.gmra.mxu0 %v287
      %v315 = vpop.f32.mrf.mxu0
      %v316 = vadd.f32 %v270, %v315
      %317 = vmatmul.f32.gmra.mxu0 %v290
      %v318 = vpop.f32.mrf.mxu0
      %v319 = vadd.f32 %v275, %v318
      %320 = vmatmul.f32.gmra.mxu0 %v293
      %v321 = vpop.f32.mrf.mxu0
      %v322 = vadd.f32 %v280, %v321
      %323 = vdwg.mxu0
      %324 = vmatpush.msra.mxu0 0.0
      %325 = vmatpush.msra.mxu0 0.0
      %326 = vmatpush.msra.mxu0 0.0
      %327 = vmatpush.msra.mxu0 0.0
      %328 = vmatpush.msra.mxu0 0.0
      %329 = vmatpush.msra.mxu0 0.0
      %330 = vmatpush.msra.mxu0 0.0
      %331 = vmatpush.msra.mxu0 0.0
      %332 = vmatpush.msra.mxu0 0.0
      %333 = vmatpush.msra.mxu0 0.0
      %334 = vmatpush.msra.mxu0 0.0
      %335 = vmatpush.msra.mxu0 0.0
      %336 = vmatpush.msra.mxu0 0.0
      %337 = vmatpush.msra.mxu0 0.0
      %338 = vmatpush.msra.mxu0 0.0
      %339 = vmatpush.msra.mxu0 %v253
      %340 = vmatmul.f32.gmra.mxu0 %v284
      %v341 = vpop.f32.mrf.mxu0
      %v342 = vadd.f32 %v265, %v341
      %343 = vmatmul.f32.gmra.mxu0 %v287
      %v344 = vpop.f32.mrf.mxu0
      %v345 = vadd.f32 %v270, %v344
      %346 = vmatmul.f32.gmra.mxu0 %v290
      %v347 = vpop.f32.mrf.mxu0
      %v348 = vadd.f32 %v275, %v347
      %349 = vmatmul.f32.gmra.mxu0 %v293
      %v350 = vpop.f32.mrf.mxu0
      %v351 = vadd.f32 %v280, %v350
      %352 = vdwg.mxu0
      %v353 = vxor.u32 %v313, 2147483648
      %v354 = vxor.u32 %v342, 2147483648
      %v355 = vxor.u32 %v316, 2147483648
      %v356 = vxor.u32 %v345, 2147483648
      %v357 = vxor.u32 %v319, 2147483648
      %v358 = vxor.u32 %v348, 2147483648
      %v359 = vxor.u32 %v322, 2147483648
      %v360 = vxor.u32 %v351, 2147483648
      %v361 = vmul.f32 %v353, 1.442695
      %v362 = vpow.pop %v361
      %v363 = vmul.f32 %v354, 1.442695
      %v364 = vpow.pop %v363
      %v365 = vmul.f32 %v355, 1.442695
      %v366 = vpow.pop %v365
      %v367 = vmul.f32 %v356, 1.442695
      %v368 = vpow.pop %v367
      %v369 = vmul.f32 %v357, 1.442695
      %v370 = vpow.pop %v369
      %v371 = vmul.f32 %v358, 1.442695
      %v372 = vpow.pop %v371
      %v373 = vmul.f32 %v359, 1.442695
      %v374 = vpow.pop %v373
      %v375 = vmul.f32 %v360, 1.442695
      %v376 = vpow.pop %v375
      %v377 = vadd.f32 %v362, 1.0
      %v378 = vadd.f32 %v364, 1.0
      %v379 = vadd.f32 %v366, 1.0
      %v380 = vadd.f32 %v368, 1.0
      %v381 = vadd.f32 %v370, 1.0
      %v382 = vadd.f32 %v372, 1.0
      %v383 = vadd.f32 %v374, 1.0
      %v384 = vadd.f32 %v376, 1.0
      %v385 = vrcp.pop %v377
      %v386 = vmul.f32 %v377, %v385
      %v387 = vsub.f32 1.0, %v386
      %v388 = vmul.f32 %v385, %v387
      %v389 = vadd.f32 %v385, %v388
      %vm390 = vweird.f32 %v377
      %vm391 = vweird.f32 %v385
      %vm392 = vmor %vm390, %vm391
      %v393 = vsel %vm392, %v385, %v389
      %v394 = vand.u32 2147483647, %v377
      %vm395 = vcmp.eq.f32.partialorder %v394, 8.507059e+37
      %v396 = vand.u32 %v377, 2147483648
      %v397 = vor.u32 1.1754944e-38, %v396
      %v398 = vsel %vm395, %v397, %v393
      %v399 = vmul.f32 1.0, %v398
      %v400 = vrcp.pop %v378
      %v401 = vmul.f32 %v378, %v400
      %v402 = vsub.f32 1.0, %v401
      %v403 = vmul.f32 %v400, %v402
      %v404 = vadd.f32 %v400, %v403
      %vm405 = vweird.f32 %v378
      %vm406 = vweird.f32 %v400
      %vm407 = vmor %vm405, %vm406
      %v408 = vsel %vm407, %v400, %v404
      %v409 = vand.u32 2147483647, %v378
      %vm410 = vcmp.eq.f32.partialorder %v409, 8.507059e+37
      %v411 = vand.u32 %v378, 2147483648
      %v412 = vor.u32 1.1754944e-38, %v411
      %v413 = vsel %vm410, %v412, %v408
      %v414 = vmul.f32 1.0, %v413
      %v415 = vrcp.pop %v379
      %v416 = vmul.f32 %v379, %v415
      %v417 = vsub.f32 1.0, %v416
      %v418 = vmul.f32 %v415, %v417
      %v419 = vadd.f32 %v415, %v418
      %vm420 = vweird.f32 %v379
      %vm421 = vweird.f32 %v415
      %vm422 = vmor %vm420, %vm421
      %v423 = vsel %vm422, %v415, %v419
      %v424 = vand.u32 2147483647, %v379
      %vm425 = vcmp.eq.f32.partialorder %v424, 8.507059e+37
      %v426 = vand.u32 %v379, 2147483648
      %v427 = vor.u32 1.1754944e-38, %v426
      %v428 = vsel %vm425, %v427, %v423
      %v429 = vmul.f32 1.0, %v428
      %v430 = vrcp.pop %v380
      %v431 = vmul.f32 %v380, %v430
      %v432 = vsub.f32 1.0, %v431
      %v433 = vmul.f32 %v430, %v432
      %v434 = vadd.f32 %v430, %v433
      %vm435 = vweird.f32 %v380
      %vm436 = vweird.f32 %v430
      %vm437 = vmor %vm435, %vm436
      %v438 = vsel %vm437, %v430, %v434
      %v439 = vand.u32 2147483647, %v380
      %vm440 = vcmp.eq.f32.partialorder %v439, 8.507059e+37
      %v441 = vand.u32 %v380, 2147483648
      %v442 = vor.u32 1.1754944e-38, %v441
      %v443 = vsel %vm440, %v442, %v438
      %v444 = vmul.f32 1.0, %v443
      %v445 = vrcp.pop %v381
      %v446 = vmul.f32 %v381, %v445
      %v447 = vsub.f32 1.0, %v446
      %v448 = vmul.f32 %v445, %v447
      %v449 = vadd.f32 %v445, %v448
      %vm450 = vweird.f32 %v381
      %vm451 = vweird.f32 %v445
      %vm452 = vmor %vm450, %vm451
      %v453 = vsel %vm452, %v445, %v449
      %v454 = vand.u32 2147483647, %v381
      %vm455 = vcmp.eq.f32.partialorder %v454, 8.507059e+37
      %v456 = vand.u32 %v381, 2147483648
      %v457 = vor.u32 1.1754944e-38, %v456
      %v458 = vsel %vm455, %v457, %v453
      %v459 = vmul.f32 1.0, %v458
      %v460 = vrcp.pop %v382
      %v461 = vmul.f32 %v382, %v460
      %v462 = vsub.f32 1.0, %v461
      %v463 = vmul.f32 %v460, %v462
      %v464 = vadd.f32 %v460, %v463
      %vm465 = vweird.f32 %v382
      %vm466 = vweird.f32 %v460
      %vm467 = vmor %vm465, %vm466
      %v468 = vsel %vm467, %v460, %v464
      %v469 = vand.u32 2147483647, %v382
      %vm470 = vcmp.eq.f32.partialorder %v469, 8.507059e+37
      %v471 = vand.u32 %v382, 2147483648
      %v472 = vor.u32 1.1754944e-38, %v471
      %v473 = vsel %vm470, %v472, %v468
      %v474 = vmul.f32 1.0, %v473
      %v475 = vrcp.pop %v383
      %v476 = vmul.f32 %v383, %v475
      %v477 = vsub.f32 1.0, %v476
      %v478 = vmul.f32 %v475, %v477
      %v479 = vadd.f32 %v475, %v478
      %vm480 = vweird.f32 %v383
      %vm481 = vweird.f32 %v475
      %vm482 = vmor %vm480, %vm481
      %v483 = vsel %vm482, %v475, %v479
      %v484 = vand.u32 2147483647, %v383
      %vm485 = vcmp.eq.f32.partialorder %v484, 8.507059e+37
      %v486 = vand.u32 %v383, 2147483648
      %v487 = vor.u32 1.1754944e-38, %v486
      %v488 = vsel %vm485, %v487, %v483
      %v489 = vmul.f32 1.0, %v488
      %v490 = vrcp.pop %v384
      %v491 = vmul.f32 %v384, %v490
      %v492 = vsub.f32 1.0, %v491
      %v493 = vmul.f32 %v490, %v492
      %v494 = vadd.f32 %v490, %v493
      %vm495 = vweird.f32 %v384
      %vm496 = vweird.f32 %v490
      %vm497 = vmor %vm495, %vm496
      %v498 = vsel %vm497, %v490, %v494
      %v499 = vand.u32 2147483647, %v384
      %vm500 = vcmp.eq.f32.partialorder %v499, 8.507059e+37
      %v501 = vand.u32 %v384, 2147483648
      %v502 = vor.u32 1.1754944e-38, %v501
      %v503 = vsel %vm500, %v502, %v498
      %v504 = vmul.f32 1.0, %v503
      %v505 = vmul.f32 %v313, %v399
      %v506 = vmul.f32 %v342, %v414
      %v507 = vmul.f32 %v316, %v429
      %v508 = vmul.f32 %v345, %v444
      %v509 = vmul.f32 %v319, %v459
      %v510 = vmul.f32 %v348, %v474
      %v511 = vmul.f32 %v322, %v489
      %v512 = vmul.f32 %v351, %v504
      %s513 = scalar_lea.vmem %s2, 256
      %v514 = vld [vmem:[%s513] sm:$0xff]
      %v515 = vld [vmem:[%s513 + $0x8] sm:$0xff]
      %v516 = vld [vmem:[%s513 + $0x10] sm:$0xff]
      %v517 = vld [vmem:[%s513 + $0x18] sm:$0xff]
      %v518 = vld [vmem:[%s513 + $0x20] sm:$0xff]
      %v519 = vld [vmem:[%s513 + $0x28] sm:$0xff]
      %v520 = vld [vmem:[%s513 + $0x30] sm:$0xff]
      %v521 = vld [vmem:[%s513 + $0x38] sm:$0xff]
      %v522 = vmul.f32 %v505, %v514
      %v523 = vmul.f32 %v506, %v515
      %v524 = vmul.f32 %v507, %v516
      %v525 = vmul.f32 %v508, %v517
      %v526 = vmul.f32 %v509, %v518
      %v527 = vmul.f32 %v510, %v519
      %v528 = vmul.f32 %v511, %v520
      %v529 = vmul.f32 %v512, %v521
      %530 = vrot.lane.b32.xlu0 %v505, 17
      %v531 = vpop.permute.xlu0 %530
      %532 = vrot.lane.b32.xlu0 %v507, 17
      %v533 = vpop.permute.xlu0 %532
      %534 = vrot.lane.b32.xlu0 %v509, 17
      %v535 = vpop.permute.xlu0 %534
      %536 = vrot.lane.b32.xlu0 %v511, 17
      %v537 = vpop.permute.xlu0 %536
      %538 = vrot.lane.b32.xlu0 %v506, 17
      %v539 = vpop.permute.xlu0 %538
      %540 = vrot.lane.b32.xlu0 %v508, 17
      %v541 = vpop.permute.xlu0 %540
      %542 = vrot.lane.b32.xlu0 %v510, 17
      %v543 = vpop.permute.xlu0 %542
      %544 = vrot.lane.b32.xlu0 %v512, 17
      %v545 = vpop.permute.xlu0 %544
      %v546 = vlaneseq
      %v547 = vand.u32 %v546, 127
      %vm548 = vcmp.lt.s32.totalorder %v547, 17
      %v549 = vsel %vm548, %v531, %v539
      %v550 = vsel %vm548, %v533, %v541
      %v551 = vsel %vm548, %v535, %v543
      %v552 = vsel %vm548, %v537, %v545
      %v553 = vsel %vm548, %v539, %v531
      %v554 = vsel %vm548, %v541, %v533
      %v555 = vsel %vm548, %v543, %v535
      %v556 = vsel %vm548, %v545, %v537
      %v557 = vld [vmem:[%s2] sm:$0xff]
      %v558 = vld [vmem:[%s2 + $0x8] sm:$0xff]
      %v559 = vld [vmem:[%s2 + $0x10] sm:$0xff]
      %v560 = vld [vmem:[%s2 + $0x18] sm:$0xff]
      %v561 = vld [vmem:[%s2 + $0x20] sm:$0xff]
      %v562 = vld [vmem:[%s2 + $0x28] sm:$0xff]
      %v563 = vld [vmem:[%s2 + $0x30] sm:$0xff]
      %v564 = vld [vmem:[%s2 + $0x38] sm:$0xff]
      %v565 = vmul.f32 %v553, %v557
      %v566 = vmul.f32 %v549, %v558
      %v567 = vmul.f32 %v554, %v559
      %v568 = vmul.f32 %v550, %v560
      %v569 = vmul.f32 %v555, %v561
      %v570 = vmul.f32 %v551, %v562
      %v571 = vmul.f32 %v556, %v563
      %v572 = vmul.f32 %v552, %v564
      %v573 = vadd.f32 %v522, %v565
      %v574 = vadd.f32 %v523, %v566
      %v575 = vadd.f32 %v524, %v567
      %v576 = vadd.f32 %v525, %v568
      %v577 = vadd.f32 %v526, %v569
      %v578 = vadd.f32 %v527, %v570
      %v579 = vadd.f32 %v528, %v571
      %v580 = vadd.f32 %v529, %v572
      %581 = vrot.lane.b32.xlu0 %v505, 16
      %v582 = vpop.permute.xlu0 %581
      %583 = vrot.lane.b32.xlu0 %v507, 16
      %v584 = vpop.permute.xlu0 %583
      %585 = vrot.lane.b32.xlu0 %v509, 16
      %v586 = vpop.permute.xlu0 %585
      %587 = vrot.lane.b32.xlu0 %v511, 16
      %v588 = vpop.permute.xlu0 %587
      %589 = vrot.lane.b32.xlu0 %v506, 16
      %v590 = vpop.permute.xlu0 %589
      %591 = vrot.lane.b32.xlu0 %v508, 16
      %v592 = vpop.permute.xlu0 %591
      %593 = vrot.lane.b32.xlu0 %v510, 16
      %v594 = vpop.permute.xlu0 %593
      %595 = vrot.lane.b32.xlu0 %v512, 16
      %v596 = vpop.permute.xlu0 %595
      %vm597 = vcmp.lt.s32.totalorder %v547, 16
      %v598 = vsel %vm597, %v582, %v590
      %v599 = vsel %vm597, %v584, %v592
      %v600 = vsel %vm597, %v586, %v594
      %v601 = vsel %vm597, %v588, %v596
      %v602 = vsel %vm597, %v590, %v582
      %v603 = vsel %vm597, %v592, %v584
      %v604 = vsel %vm597, %v594, %v586
      %v605 = vsel %vm597, %v596, %v588
      %s606 = scalar_lea.vmem %s2, 64
      %v607 = vld [vmem:[%s606] sm:$0xff]
      %v608 = vld [vmem:[%s606 + $0x8] sm:$0xff]
      %v609 = vld [vmem:[%s606 + $0x10] sm:$0xff]
      %v610 = vld [vmem:[%s606 + $0x18] sm:$0xff]
      %v611 = vld [vmem:[%s606 + $0x20] sm:$0xff]
      %v612 = vld [vmem:[%s606 + $0x28] sm:$0xff]
      %v613 = vld [vmem:[%s606 + $0x30] sm:$0xff]
      %v614 = vld [vmem:[%s606 + $0x38] sm:$0xff]
      %v615 = vmul.f32 %v602, %v607
      %v616 = vmul.f32 %v598, %v608
      %v617 = vmul.f32 %v603, %v609
      %v618 = vmul.f32 %v599, %v610
      %v619 = vmul.f32 %v604, %v611
      %v620 = vmul.f32 %v600, %v612
      %v621 = vmul.f32 %v605, %v613
      %v622 = vmul.f32 %v601, %v614
      %v623 = vadd.f32 %v573, %v615
      %v624 = vadd.f32 %v574, %v616
      %v625 = vadd.f32 %v575, %v617
      %v626 = vadd.f32 %v576, %v618
      %v627 = vadd.f32 %v577, %v619
      %v628 = vadd.f32 %v578, %v620
      %v629 = vadd.f32 %v579, %v621
      %v630 = vadd.f32 %v580, %v622
      %631 = vrot.lane.b32.xlu0 %v505, 15
      %v632 = vpop.permute.xlu0 %631
      %633 = vrot.lane.b32.xlu0 %v507, 15
      %v634 = vpop.permute.xlu0 %633
      %635 = vrot.lane.b32.xlu0 %v509, 15
      %v636 = vpop.permute.xlu0 %635
      %637 = vrot.lane.b32.xlu0 %v511, 15
      %v638 = vpop.permute.xlu0 %637
      %639 = vrot.lane.b32.xlu0 %v506, 15
      %v640 = vpop.permute.xlu0 %639
      %641 = vrot.lane.b32.xlu0 %v508, 15
      %v642 = vpop.permute.xlu0 %641
      %643 = vrot.lane.b32.xlu0 %v510, 15
      %v644 = vpop.permute.xlu0 %643
      %645 = vrot.lane.b32.xlu0 %v512, 15
      %v646 = vpop.permute.xlu0 %645
      %vm647 = vcmp.lt.s32.totalorder %v547, 15
      %v648 = vsel %vm647, %v632, %v640
      %v649 = vsel %vm647, %v634, %v642
      %v650 = vsel %vm647, %v636, %v644
      %v651 = vsel %vm647, %v638, %v646
      %v652 = vsel %vm647, %v640, %v632
      %v653 = vsel %vm647, %v642, %v634
      %v654 = vsel %vm647, %v644, %v636
      %v655 = vsel %vm647, %v646, %v638
      %s656 = scalar_lea.vmem %s2, 128
      %v657 = vld [vmem:[%s656] sm:$0xff]
      %v658 = vld [vmem:[%s656 + $0x8] sm:$0xff]
      %v659 = vld [vmem:[%s656 + $0x10] sm:$0xff]
      %v660 = vld [vmem:[%s656 + $0x18] sm:$0xff]
      %v661 = vld [vmem:[%s656 + $0x20] sm:$0xff]
      %v662 = vld [vmem:[%s656 + $0x28] sm:$0xff]
      %v663 = vld [vmem:[%s656 + $0x30] sm:$0xff]
      %v664 = vld [vmem:[%s656 + $0x38] sm:$0xff]
      %v665 = vmul.f32 %v652, %v657
      %v666 = vmul.f32 %v648, %v658
      %v667 = vmul.f32 %v653, %v659
      %v668 = vmul.f32 %v649, %v660
      %v669 = vmul.f32 %v654, %v661
      %v670 = vmul.f32 %v650, %v662
      %v671 = vmul.f32 %v655, %v663
      %v672 = vmul.f32 %v651, %v664
      %v673 = vadd.f32 %v623, %v665
      %v674 = vadd.f32 %v624, %v666
      %v675 = vadd.f32 %v625, %v667
      %v676 = vadd.f32 %v626, %v668
      %v677 = vadd.f32 %v627, %v669
      %v678 = vadd.f32 %v628, %v670
      %v679 = vadd.f32 %v629, %v671
      %v680 = vadd.f32 %v630, %v672
      %681 = vrot.lane.b32.xlu0 %v505, 1
      %v682 = vpop.permute.xlu0 %681
      %683 = vrot.lane.b32.xlu0 %v507, 1
      %v684 = vpop.permute.xlu0 %683
      %685 = vrot.lane.b32.xlu0 %v509, 1
      %v686 = vpop.permute.xlu0 %685
      %687 = vrot.lane.b32.xlu0 %v511, 1
      %v688 = vpop.permute.xlu0 %687
      %689 = vrot.lane.b32.xlu0 %v506, 1
      %v690 = vpop.permute.xlu0 %689
      %691 = vrot.lane.b32.xlu0 %v508, 1
      %v692 = vpop.permute.xlu0 %691
      %693 = vrot.lane.b32.xlu0 %v510, 1
      %v694 = vpop.permute.xlu0 %693
      %695 = vrot.lane.b32.xlu0 %v512, 1
      %v696 = vpop.permute.xlu0 %695
      %vm697 = vcmp.lt.s32.totalorder %v547, 1
      %v698 = vsel %vm697, %v682, %v690
      %v699 = vsel %vm697, %v684, %v692
      %v700 = vsel %vm697, %v686, %v694
      %v701 = vsel %vm697, %v688, %v696
      %v702 = vsel %vm697, %v690, %v682
      %v703 = vsel %vm697, %v692, %v684
      %v704 = vsel %vm697, %v694, %v686
      %v705 = vsel %vm697, %v696, %v688
      %s706 = scalar_lea.vmem %s2, 192
      %v707 = vld [vmem:[%s706] sm:$0xff]
      %v708 = vld [vmem:[%s706 + $0x8] sm:$0xff]
      %v709 = vld [vmem:[%s706 + $0x10] sm:$0xff]
      %v710 = vld [vmem:[%s706 + $0x18] sm:$0xff]
      %v711 = vld [vmem:[%s706 + $0x20] sm:$0xff]
      %v712 = vld [vmem:[%s706 + $0x28] sm:$0xff]
      %v713 = vld [vmem:[%s706 + $0x30] sm:$0xff]
      %v714 = vld [vmem:[%s706 + $0x38] sm:$0xff]
      %v715 = vmul.f32 %v702, %v707
      %v716 = vmul.f32 %v698, %v708
      %v717 = vmul.f32 %v703, %v709
      %v718 = vmul.f32 %v699, %v710
      %v719 = vmul.f32 %v704, %v711
      %v720 = vmul.f32 %v700, %v712
      %v721 = vmul.f32 %v705, %v713
      %v722 = vmul.f32 %v701, %v714
      %v723 = vadd.f32 %v673, %v715
      %v724 = vadd.f32 %v674, %v716
      %v725 = vadd.f32 %v675, %v717
      %v726 = vadd.f32 %v676, %v718
      %v727 = vadd.f32 %v677, %v719
      %v728 = vadd.f32 %v678, %v720
      %v729 = vadd.f32 %v679, %v721
      %v730 = vadd.f32 %v680, %v722
      %731 = vrot.lane.b32.xlu0 %v505, 127
      %v732 = vpop.permute.xlu0 %731
      %733 = vrot.lane.b32.xlu0 %v507, 127
      %v734 = vpop.permute.xlu0 %733
      %735 = vrot.lane.b32.xlu0 %v509, 127
      %v736 = vpop.permute.xlu0 %735
      %737 = vrot.lane.b32.xlu0 %v511, 127
      %v738 = vpop.permute.xlu0 %737
      %739 = vrot.lane.b32.xlu0 %v506, 127
      %v740 = vpop.permute.xlu0 %739
      %741 = vrot.lane.b32.xlu0 %v508, 127
      %v742 = vpop.permute.xlu0 %741
      %743 = vrot.lane.b32.xlu0 %v510, 127
      %v744 = vpop.permute.xlu0 %743
      %745 = vrot.lane.b32.xlu0 %v512, 127
      %v746 = vpop.permute.xlu0 %745
      %vm747 = vcmp.lt.s32.totalorder %v547, 127
      %v748 = vsel %vm747, %v732, %v740
      %v749 = vsel %vm747, %v734, %v742
      %v750 = vsel %vm747, %v736, %v744
      %v751 = vsel %vm747, %v738, %v746
      %v752 = vsel %vm747, %v740, %v732
      %v753 = vsel %vm747, %v742, %v734
      %v754 = vsel %vm747, %v744, %v736
      %v755 = vsel %vm747, %v746, %v738
      %s756 = scalar_lea.vmem %s2, 320
      %v757 = vld [vmem:[%s756] sm:$0xff]
      %v758 = vld [vmem:[%s756 + $0x8] sm:$0xff]
      %v759 = vld [vmem:[%s756 + $0x10] sm:$0xff]
      %v760 = vld [vmem:[%s756 + $0x18] sm:$0xff]
      %v761 = vld [vmem:[%s756 + $0x20] sm:$0xff]
      %v762 = vld [vmem:[%s756 + $0x28] sm:$0xff]
      %v763 = vld [vmem:[%s756 + $0x30] sm:$0xff]
      %v764 = vld [vmem:[%s756 + $0x38] sm:$0xff]
      %v765 = vmul.f32 %v748, %v757
      %v766 = vmul.f32 %v752, %v758
      %v767 = vmul.f32 %v749, %v759
      %v768 = vmul.f32 %v753, %v760
      %v769 = vmul.f32 %v750, %v761
      %v770 = vmul.f32 %v754, %v762
      %v771 = vmul.f32 %v751, %v763
      %v772 = vmul.f32 %v755, %v764
      %v773 = vadd.f32 %v723, %v765
      %v774 = vadd.f32 %v724, %v766
      %v775 = vadd.f32 %v725, %v767
      %v776 = vadd.f32 %v726, %v768
      %v777 = vadd.f32 %v727, %v769
      %v778 = vadd.f32 %v728, %v770
      %v779 = vadd.f32 %v729, %v771
      %v780 = vadd.f32 %v730, %v772
      %781 = vrot.lane.b32.xlu0 %v505, 113
      %v782 = vpop.permute.xlu0 %781
      %783 = vrot.lane.b32.xlu0 %v507, 113
      %v784 = vpop.permute.xlu0 %783
      %785 = vrot.lane.b32.xlu0 %v509, 113
      %v786 = vpop.permute.xlu0 %785
      %787 = vrot.lane.b32.xlu0 %v511, 113
      %v788 = vpop.permute.xlu0 %787
      %789 = vrot.lane.b32.xlu0 %v506, 113
      %v790 = vpop.permute.xlu0 %789
      %791 = vrot.lane.b32.xlu0 %v508, 113
      %v792 = vpop.permute.xlu0 %791
      %793 = vrot.lane.b32.xlu0 %v510, 113
      %v794 = vpop.permute.xlu0 %793
      %795 = vrot.lane.b32.xlu0 %v512, 113
      %v796 = vpop.permute.xlu0 %795
      %vm797 = vcmp.lt.s32.totalorder %v547, 113
      %v798 = vsel %vm797, %v782, %v790
      %v799 = vsel %vm797, %v784, %v792
      %v800 = vsel %vm797, %v786, %v794
      %v801 = vsel %vm797, %v788, %v796
      %v802 = vsel %vm797, %v790, %v782
      %v803 = vsel %vm797, %v792, %v784
      %v804 = vsel %vm797, %v794, %v786
      %v805 = vsel %vm797, %v796, %v788
      %s806 = scalar_lea.vmem %s2, 384
      %v807 = vld [vmem:[%s806] sm:$0xff]
      %v808 = vld [vmem:[%s806 + $0x8] sm:$0xff]
      %v809 = vld [vmem:[%s806 + $0x10] sm:$0xff]
      %v810 = vld [vmem:[%s806 + $0x18] sm:$0xff]
      %v811 = vld [vmem:[%s806 + $0x20] sm:$0xff]
      %v812 = vld [vmem:[%s806 + $0x28] sm:$0xff]
      %v813 = vld [vmem:[%s806 + $0x30] sm:$0xff]
      %v814 = vld [vmem:[%s806 + $0x38] sm:$0xff]
      %v815 = vmul.f32 %v798, %v807
      %v816 = vmul.f32 %v802, %v808
      %v817 = vmul.f32 %v799, %v809
      %v818 = vmul.f32 %v803, %v810
      %v819 = vmul.f32 %v800, %v811
      %v820 = vmul.f32 %v804, %v812
      %v821 = vmul.f32 %v801, %v813
      %v822 = vmul.f32 %v805, %v814
      %v823 = vadd.f32 %v773, %v815
      %v824 = vadd.f32 %v774, %v816
      %v825 = vadd.f32 %v775, %v817
      %v826 = vadd.f32 %v776, %v818
      %v827 = vadd.f32 %v777, %v819
      %v828 = vadd.f32 %v778, %v820
      %v829 = vadd.f32 %v779, %v821
      %v830 = vadd.f32 %v780, %v822
      %831 = vrot.lane.b32.xlu0 %v505, 112
      %v832 = vpop.permute.xlu0 %831
      %833 = vrot.lane.b32.xlu0 %v507, 112
      %v834 = vpop.permute.xlu0 %833
      %835 = vrot.lane.b32.xlu0 %v509, 112
      %v836 = vpop.permute.xlu0 %835
      %837 = vrot.lane.b32.xlu0 %v511, 112
      %v838 = vpop.permute.xlu0 %837
      %839 = vrot.lane.b32.xlu0 %v506, 112
      %v840 = vpop.permute.xlu0 %839
      %841 = vrot.lane.b32.xlu0 %v508, 112
      %v842 = vpop.permute.xlu0 %841
      %843 = vrot.lane.b32.xlu0 %v510, 112
      %v844 = vpop.permute.xlu0 %843
      %845 = vrot.lane.b32.xlu0 %v512, 112
      %v846 = vpop.permute.xlu0 %845
      %vm847 = vcmp.lt.s32.totalorder %v547, 112
      %v848 = vsel %vm847, %v832, %v840
      %v849 = vsel %vm847, %v834, %v842
      %v850 = vsel %vm847, %v836, %v844
      %v851 = vsel %vm847, %v838, %v846
      %v852 = vsel %vm847, %v840, %v832
      %v853 = vsel %vm847, %v842, %v834
      %v854 = vsel %vm847, %v844, %v836
      %v855 = vsel %vm847, %v846, %v838
      %s856 = scalar_lea.vmem %s2, 448
      %v857 = vld [vmem:[%s856] sm:$0xff]
      %v858 = vld [vmem:[%s856 + $0x8] sm:$0xff]
      %v859 = vld [vmem:[%s856 + $0x10] sm:$0xff]
      %v860 = vld [vmem:[%s856 + $0x18] sm:$0xff]
      %v861 = vld [vmem:[%s856 + $0x20] sm:$0xff]
      %v862 = vld [vmem:[%s856 + $0x28] sm:$0xff]
      %v863 = vld [vmem:[%s856 + $0x30] sm:$0xff]
      %v864 = vld [vmem:[%s856 + $0x38] sm:$0xff]
      %v865 = vmul.f32 %v848, %v857
      %v866 = vmul.f32 %v852, %v858
      %v867 = vmul.f32 %v849, %v859
      %v868 = vmul.f32 %v853, %v860
      %v869 = vmul.f32 %v850, %v861
      %v870 = vmul.f32 %v854, %v862
      %v871 = vmul.f32 %v851, %v863
      %v872 = vmul.f32 %v855, %v864
      %v873 = vadd.f32 %v823, %v865
      %v874 = vadd.f32 %v824, %v866
      %v875 = vadd.f32 %v825, %v867
      %v876 = vadd.f32 %v826, %v868
      %v877 = vadd.f32 %v827, %v869
      %v878 = vadd.f32 %v828, %v870
      %v879 = vadd.f32 %v829, %v871
      %v880 = vadd.f32 %v830, %v872
      %881 = vrot.lane.b32.xlu0 %v505, 111
      %v882 = vpop.permute.xlu0 %881
      %883 = vrot.lane.b32.xlu0 %v507, 111
      %v884 = vpop.permute.xlu0 %883
      %885 = vrot.lane.b32.xlu0 %v509, 111
      %v886 = vpop.permute.xlu0 %885
      %887 = vrot.lane.b32.xlu0 %v511, 111
      %v888 = vpop.permute.xlu0 %887
      %889 = vrot.lane.b32.xlu0 %v506, 111
      %v890 = vpop.permute.xlu0 %889
      %891 = vrot.lane.b32.xlu0 %v508, 111
      %v892 = vpop.permute.xlu0 %891
      %893 = vrot.lane.b32.xlu0 %v510, 111
      %v894 = vpop.permute.xlu0 %893
      %895 = vrot.lane.b32.xlu0 %v512, 111
      %v896 = vpop.permute.xlu0 %895
      %vm897 = vcmp.lt.s32.totalorder %v547, 111
      %v898 = vsel %vm897, %v882, %v890
      %v899 = vsel %vm897, %v884, %v892
      %v900 = vsel %vm897, %v886, %v894
      %v901 = vsel %vm897, %v888, %v896
      %v902 = vsel %vm897, %v890, %v882
      %v903 = vsel %vm897, %v892, %v884
      %v904 = vsel %vm897, %v894, %v886
      %v905 = vsel %vm897, %v896, %v888
      %s906 = scalar_lea.vmem %s2, 512
      %v907 = vld [vmem:[%s906] sm:$0xff]
      %v908 = vld [vmem:[%s906 + $0x8] sm:$0xff]
      %v909 = vld [vmem:[%s906 + $0x10] sm:$0xff]
      %v910 = vld [vmem:[%s906 + $0x18] sm:$0xff]
      %v911 = vld [vmem:[%s906 + $0x20] sm:$0xff]
      %v912 = vld [vmem:[%s906 + $0x28] sm:$0xff]
      %v913 = vld [vmem:[%s906 + $0x30] sm:$0xff]
      %v914 = vld [vmem:[%s906 + $0x38] sm:$0xff]
      %v915 = vmul.f32 %v898, %v907
      %v916 = vmul.f32 %v902, %v908
      %v917 = vmul.f32 %v899, %v909
      %v918 = vmul.f32 %v903, %v910
      %v919 = vmul.f32 %v900, %v911
      %v920 = vmul.f32 %v904, %v912
      %v921 = vmul.f32 %v901, %v913
      %v922 = vmul.f32 %v905, %v914
      %v923 = vadd.f32 %v873, %v915
      %v924 = vadd.f32 %v874, %v916
      %v925 = vadd.f32 %v875, %v917
      %v926 = vadd.f32 %v876, %v918
      %v927 = vadd.f32 %v877, %v919
      %v928 = vadd.f32 %v878, %v920
      %v929 = vadd.f32 %v879, %v921
      %v930 = vadd.f32 %v880, %v922
      %931 = vset.pattern.permute.xlu0 1
      %932 = vperm.xlu0 %931, %v254
      %v933 = vpop.permute.xlu0 %932
      %935 = vset.pattern.permute.xlu0 1
      %936 = vperm.xlu0 %935, %v255
      %v937 = vpop.permute.xlu0 %936
      %939 = vset.pattern.permute.xlu0 1
      %940 = vperm.xlu0 %939, %v256
      %v941 = vpop.permute.xlu0 %940
      %943 = vset.pattern.permute.xlu0 1
      %944 = vperm.xlu0 %943, %v257
      %v945 = vpop.permute.xlu0 %944
      %v947 = vadd.f32 %v923, %v933
      %v948 = vadd.f32 %v924, %v933
      %v949 = vadd.f32 %v925, %v937
      %v950 = vadd.f32 %v926, %v937
      %v951 = vadd.f32 %v927, %v941
      %v952 = vadd.f32 %v928, %v941
      %v953 = vadd.f32 %v929, %v945
      %v954 = vadd.f32 %v930, %v945
      %v955 = vxor.u32 %v947, 2147483648
      %v956 = vxor.u32 %v948, 2147483648
      %v957 = vxor.u32 %v949, 2147483648
      %v958 = vxor.u32 %v950, 2147483648
      %v959 = vxor.u32 %v951, 2147483648
      %v960 = vxor.u32 %v952, 2147483648
      %v961 = vxor.u32 %v953, 2147483648
      %v962 = vxor.u32 %v954, 2147483648
      %v963 = vmul.f32 %v955, 1.442695
      %v964 = vpow.pop %v963
      %v965 = vmul.f32 %v956, 1.442695
      %v966 = vpow.pop %v965
      %v967 = vmul.f32 %v957, 1.442695
      %v968 = vpow.pop %v967
      %v969 = vmul.f32 %v958, 1.442695
      %v970 = vpow.pop %v969
      %v971 = vmul.f32 %v959, 1.442695
      %v972 = vpow.pop %v971
      %v973 = vmul.f32 %v960, 1.442695
      %v974 = vpow.pop %v973
      %v975 = vmul.f32 %v961, 1.442695
      %v976 = vpow.pop %v975
      %v977 = vmul.f32 %v962, 1.442695
      %v978 = vpow.pop %v977
      %v979 = vadd.f32 %v964, 1.0
      %v980 = vadd.f32 %v966, 1.0
      %v981 = vadd.f32 %v968, 1.0
      %v982 = vadd.f32 %v970, 1.0
      %v983 = vadd.f32 %v972, 1.0
      %v984 = vadd.f32 %v974, 1.0
      %v985 = vadd.f32 %v976, 1.0
      %v986 = vadd.f32 %v978, 1.0
      %v987 = vrcp.pop %v979
      %v988 = vmul.f32 %v979, %v987
      %v989 = vsub.f32 1.0, %v988
      %v990 = vmul.f32 %v987, %v989
      %v991 = vadd.f32 %v987, %v990
      %vm992 = vweird.f32 %v979
      %vm993 = vweird.f32 %v987
      %vm994 = vmor %vm992, %vm993
      %v995 = vsel %vm994, %v987, %v991
      %v996 = vand.u32 2147483647, %v979
      %vm997 = vcmp.eq.f32.partialorder %v996, 8.507059e+37
      %v998 = vand.u32 %v979, 2147483648
      %v999 = vor.u32 1.1754944e-38, %v998
      %v1000 = vsel %vm997, %v999, %v995
      %v1001 = vmul.f32 1.0, %v1000
      %v1002 = vrcp.pop %v980
      %v1003 = vmul.f32 %v980, %v1002
      %v1004 = vsub.f32 1.0, %v1003
      %v1005 = vmul.f32 %v1002, %v1004
      %v1006 = vadd.f32 %v1002, %v1005
      %vm1007 = vweird.f32 %v980
      %vm1008 = vweird.f32 %v1002
      %vm1009 = vmor %vm1007, %vm1008
      %v1010 = vsel %vm1009, %v1002, %v1006
      %v1011 = vand.u32 2147483647, %v980
      %vm1012 = vcmp.eq.f32.partialorder %v1011, 8.507059e+37
      %v1013 = vand.u32 %v980, 2147483648
      %v1014 = vor.u32 1.1754944e-38, %v1013
      %v1015 = vsel %vm1012, %v1014, %v1010
      %v1016 = vmul.f32 1.0, %v1015
      %v1017 = vrcp.pop %v981
      %v1018 = vmul.f32 %v981, %v1017
      %v1019 = vsub.f32 1.0, %v1018
      %v1020 = vmul.f32 %v1017, %v1019
      %v1021 = vadd.f32 %v1017, %v1020
      %vm1022 = vweird.f32 %v981
      %vm1023 = vweird.f32 %v1017
      %vm1024 = vmor %vm1022, %vm1023
      %v1025 = vsel %vm1024, %v1017, %v1021
      %v1026 = vand.u32 2147483647, %v981
      %vm1027 = vcmp.eq.f32.partialorder %v1026, 8.507059e+37
      %v1028 = vand.u32 %v981, 2147483648
      %v1029 = vor.u32 1.1754944e-38, %v1028
      %v1030 = vsel %vm1027, %v1029, %v1025
      %v1031 = vmul.f32 1.0, %v1030
      %v1032 = vrcp.pop %v982
      %v1033 = vmul.f32 %v982, %v1032
      %v1034 = vsub.f32 1.0, %v1033
      %v1035 = vmul.f32 %v1032, %v1034
      %v1036 = vadd.f32 %v1032, %v1035
      %vm1037 = vweird.f32 %v982
      %vm1038 = vweird.f32 %v1032
      %vm1039 = vmor %vm1037, %vm1038
      %v1040 = vsel %vm1039, %v1032, %v1036
      %v1041 = vand.u32 2147483647, %v982
      %vm1042 = vcmp.eq.f32.partialorder %v1041, 8.507059e+37
      %v1043 = vand.u32 %v982, 2147483648
      %v1044 = vor.u32 1.1754944e-38, %v1043
      %v1045 = vsel %vm1042, %v1044, %v1040
      %v1046 = vmul.f32 1.0, %v1045
      %v1047 = vrcp.pop %v983
      %v1048 = vmul.f32 %v983, %v1047
      %v1049 = vsub.f32 1.0, %v1048
      %v1050 = vmul.f32 %v1047, %v1049
      %v1051 = vadd.f32 %v1047, %v1050
      %vm1052 = vweird.f32 %v983
      %vm1053 = vweird.f32 %v1047
      %vm1054 = vmor %vm1052, %vm1053
      %v1055 = vsel %vm1054, %v1047, %v1051
      %v1056 = vand.u32 2147483647, %v983
      %vm1057 = vcmp.eq.f32.partialorder %v1056, 8.507059e+37
      %v1058 = vand.u32 %v983, 2147483648
      %v1059 = vor.u32 1.1754944e-38, %v1058
      %v1060 = vsel %vm1057, %v1059, %v1055
      %v1061 = vmul.f32 1.0, %v1060
      %v1062 = vrcp.pop %v984
      %v1063 = vmul.f32 %v984, %v1062
      %v1064 = vsub.f32 1.0, %v1063
      %v1065 = vmul.f32 %v1062, %v1064
      %v1066 = vadd.f32 %v1062, %v1065
      %vm1067 = vweird.f32 %v984
      %vm1068 = vweird.f32 %v1062
      %vm1069 = vmor %vm1067, %vm1068
      %v1070 = vsel %vm1069, %v1062, %v1066
      %v1071 = vand.u32 2147483647, %v984
      %vm1072 = vcmp.eq.f32.partialorder %v1071, 8.507059e+37
      %v1073 = vand.u32 %v984, 2147483648
      %v1074 = vor.u32 1.1754944e-38, %v1073
      %v1075 = vsel %vm1072, %v1074, %v1070
      %v1076 = vmul.f32 1.0, %v1075
      %v1077 = vrcp.pop %v985
      %v1078 = vmul.f32 %v985, %v1077
      %v1079 = vsub.f32 1.0, %v1078
      %v1080 = vmul.f32 %v1077, %v1079
      %v1081 = vadd.f32 %v1077, %v1080
      %vm1082 = vweird.f32 %v985
      %vm1083 = vweird.f32 %v1077
      %vm1084 = vmor %vm1082, %vm1083
      %v1085 = vsel %vm1084, %v1077, %v1081
      %v1086 = vand.u32 2147483647, %v985
      %vm1087 = vcmp.eq.f32.partialorder %v1086, 8.507059e+37
      %v1088 = vand.u32 %v985, 2147483648
      %v1089 = vor.u32 1.1754944e-38, %v1088
      %v1090 = vsel %vm1087, %v1089, %v1085
      %v1091 = vmul.f32 1.0, %v1090
      %v1092 = vrcp.pop %v986
      %v1093 = vmul.f32 %v986, %v1092
      %v1094 = vsub.f32 1.0, %v1093
      %v1095 = vmul.f32 %v1092, %v1094
      %v1096 = vadd.f32 %v1092, %v1095
      %vm1097 = vweird.f32 %v986
      %vm1098 = vweird.f32 %v1092
      %vm1099 = vmor %vm1097, %vm1098
      %v1100 = vsel %vm1099, %v1092, %v1096
      %v1101 = vand.u32 2147483647, %v986
      %vm1102 = vcmp.eq.f32.partialorder %v1101, 8.507059e+37
      %v1103 = vand.u32 %v986, 2147483648
      %v1104 = vor.u32 1.1754944e-38, %v1103
      %v1105 = vsel %vm1102, %v1104, %v1100
      %v1106 = vmul.f32 1.0, %v1105
      %v1107 = vmul.f32 %v947, %v1001
      %v1108 = vmul.f32 %v948, %v1016
      %v1109 = vmul.f32 %v949, %v1031
      %v1110 = vmul.f32 %v950, %v1046
      %v1111 = vmul.f32 %v951, %v1061
      %v1112 = vmul.f32 %v952, %v1076
      %v1113 = vmul.f32 %v953, %v1091
      %v1114 = vmul.f32 %v954, %v1106
      %v1115 = vadd.f32 %v1107, %v1108
      %1116 = vadd.xlane.f32.xlu0 %v1115
      %v1117 = vpop.xlane.xlu0 %1116
      %v1118 = vadd.f32 %v1109, %v1110
      %1119 = vadd.xlane.f32.xlu0 %v1118
      %v1120 = vpop.xlane.xlu0 %1119
      %v1121 = vadd.f32 %v1111, %v1112
      %1122 = vadd.xlane.f32.xlu0 %v1121
      %v1123 = vpop.xlane.xlu0 %1122
      %v1124 = vadd.f32 %v1113, %v1114
      %1125 = vadd.xlane.f32.xlu0 %v1124
      %v1126 = vpop.xlane.xlu0 %1125
      %v1127 = vrcp.pop 256.0
      %v1128 = vmul.f32 256.0, %v1127
      %v1129 = vsub.f32 1.0, %v1128
      %v1130 = vmul.f32 %v1127, %v1129
      %v1131 = vadd.f32 %v1127, %v1130
      %vm1132 = vweird.f32 %v1127
      %v1133 = vsel %vm1132, %v1127, %v1131
      %v1134 = vmul.f32 %v1117, %v1133
      %v1135 = vmul.f32 %v1120, %v1133
      %v1136 = vmul.f32 %v1123, %v1133
      %v1137 = vmul.f32 %v1126, %v1133
      %v1138 = vmul.f32 %v1134, %v254
      %v1139 = vmul.f32 %v1135, %v255
      %v1140 = vmul.f32 %v1136, %v256
      %v1141 = vmul.f32 %v1137, %v257
      %vm1142 = vcmask 48160
      %v1143 = vsel %vm1142, %v1138, 0.0
      %v1144 = vsel %vm1142, %v1139, 0.0
      %v1145 = vadd.f32 %v1143, %v1144
      %v1146 = vsel %vm1142, %v1140, 0.0
      %v1147 = vadd.f32 %v1145, %v1146
      %v1148 = vsel %vm1142, %v1141, 0.0
      %v1149 = vadd.f32 %v1147, %v1148
      %v1150 = vrot.slane %v1149, 4
      %v1151 = vadd.f32 %v1149, %v1150
      %v1152 = vrot.slane %v1151, 2
      %v1153 = vadd.f32 %v1151, %v1152
      %v1154 = vrot.slane %v1153, 1
      %v1155 = vadd.f32 %v1153, %v1154
      %v1156 = vld [vmem:[%s5] sm:$0x1]
      %v1158 = vperm.slane %v1156, 0
      %1159 = vrot.lane.b32.xlu0 %v1158, 4
      %v1160 = vpop.permute.xlu0 %1159
      %v1162 = vadd.f32 %v1155, %v1160
      %v1163 = vxor.u32 %v1162, 2147483648
      %v1164 = vmul.f32 %v1163, 1.442695
      %v1165 = vpow.pop %v1164
      %v1166 = vadd.f32 %v1165, 1.0
      %v1167 = vrcp.pop %v1166
      %v1168 = vmul.f32 %v1166, %v1167
      %v1169 = vsub.f32 1.0, %v1168
      %v1170 = vmul.f32 %v1167, %v1169
      %v1171 = vadd.f32 %v1167, %v1170
      %vm1172 = vweird.f32 %v1166
      %vm1173 = vweird.f32 %v1167
      %vm1174 = vmor %vm1172, %vm1173
      %v1175 = vsel %vm1174, %v1167, %v1171
      %v1176 = vand.u32 2147483647, %v1166
      %vm1177 = vcmp.eq.f32.partialorder %v1176, 8.507059e+37
      %v1178 = vand.u32 %v1166, 2147483648
      %v1179 = vor.u32 1.1754944e-38, %v1178
      %v1180 = vsel %vm1177, %v1179, %v1175
      %v1181 = vmul.f32 1.0, %v1180
      %v1182 = vmul.f32 %v1162, %v1181
      %v1183 = vperm.slane %v1182, 0
      %1184 = vrot.lane.b32.xlu0 %v254, 126
      %v1185 = vpop.permute.xlu0 %1184
      %1186 = vrot.lane.b32.xlu0 %v255, 126
      %v1187 = vpop.permute.xlu0 %1186
      %1188 = vrot.lane.b32.xlu0 %v256, 126
      %v1189 = vpop.permute.xlu0 %1188
      %1190 = vrot.lane.b32.xlu0 %v257, 126
      %v1191 = vpop.permute.xlu0 %1190
      %v1196 = vmul.f32 %v1183, %v1185
      %v1197 = vmul.f32 %v1183, %v1187
      %v1198 = vmul.f32 %v1183, %v1189
      %v1199 = vmul.f32 %v1183, %v1191
      %1204 = vrot.lane.b32.xlu0 %v1196, 124
      %v1205 = vpop.permute.xlu0 %1204
      %1206 = vrot.lane.b32.xlu0 %v1197, 124
      %v1207 = vpop.permute.xlu0 %1206
      %1208 = vrot.lane.b32.xlu0 %v1198, 124
      %v1209 = vpop.permute.xlu0 %1208
      %1210 = vrot.lane.b32.xlu0 %v1199, 124
      %v1211 = vpop.permute.xlu0 %1210
      %vm1216 = vcmask 15360
      %v1217 = vsel %vm1216, %v1205, 0.0
      %1218 = vadd.xlane.f32.xlu0 %v1217
      %v1219 = vpop.xlane.xlu0 %1218
      %v1220 = vsel %vm1216, %v1207, 0.0
      %1221 = vadd.xlane.f32.xlu0 %v1220
      %v1222 = vpop.xlane.xlu0 %1221
      %v1223 = vsel %vm1216, %v1209, 0.0
      %1224 = vadd.xlane.f32.xlu0 %v1223
      %v1225 = vpop.xlane.xlu0 %1224
      %v1226 = vsel %vm1216, %v1211, 0.0
      %1227 = vadd.xlane.f32.xlu0 %v1226
      %v1228 = vpop.xlane.xlu0 %1227
      %v1229 = vadd.f32 %v1219, %v254
      %v1230 = vadd.f32 %v1222, %v255
      %v1231 = vadd.f32 %v1225, %v256
      %v1232 = vadd.f32 %v1228, %v257
      %v1233 = vxor.u32 %v1229, 2147483648
      %v1234 = vxor.u32 %v1230, 2147483648
      %v1235 = vxor.u32 %v1231, 2147483648
      %v1236 = vxor.u32 %v1232, 2147483648
      %v1237 = vmul.f32 %v1233, 1.442695
      %v1238 = vpow.pop %v1237
      %v1239 = vmul.f32 %v1234, 1.442695
      %v1240 = vpow.pop %v1239
      %v1241 = vmul.f32 %v1235, 1.442695
      %v1242 = vpow.pop %v1241
      %v1243 = vmul.f32 %v1236, 1.442695
      %v1244 = vpow.pop %v1243
      %v1245 = vadd.f32 %v1238, 1.0
      %v1246 = vadd.f32 %v1240, 1.0
      %v1247 = vadd.f32 %v1242, 1.0
      %v1248 = vadd.f32 %v1244, 1.0
      %v1249 = vrcp.pop %v1245
      %v1250 = vmul.f32 %v1245, %v1249
      %v1251 = vsub.f32 1.0, %v1250
      %v1252 = vmul.f32 %v1249, %v1251
      %v1253 = vadd.f32 %v1249, %v1252
      %vm1254 = vweird.f32 %v1245
      %vm1255 = vweird.f32 %v1249
      %vm1256 = vmor %vm1254, %vm1255
      %v1257 = vsel %vm1256, %v1249, %v1253
      %v1258 = vand.u32 2147483647, %v1245
      %vm1259 = vcmp.eq.f32.partialorder %v1258, 8.507059e+37
      %v1260 = vand.u32 %v1245, 2147483648
      %v1261 = vor.u32 1.1754944e-38, %v1260
      %v1262 = vsel %vm1259, %v1261, %v1257
      %v1263 = vmul.f32 1.0, %v1262
      %v1264 = vrcp.pop %v1246
      %v1265 = vmul.f32 %v1246, %v1264
      %v1266 = vsub.f32 1.0, %v1265
      %v1267 = vmul.f32 %v1264, %v1266
      %v1268 = vadd.f32 %v1264, %v1267
      %vm1269 = vweird.f32 %v1246
      %vm1270 = vweird.f32 %v1264
      %vm1271 = vmor %vm1269, %vm1270
      %v1272 = vsel %vm1271, %v1264, %v1268
      %v1273 = vand.u32 2147483647, %v1246
      %vm1274 = vcmp.eq.f32.partialorder %v1273, 8.507059e+37
      %v1275 = vand.u32 %v1246, 2147483648
      %v1276 = vor.u32 1.1754944e-38, %v1275
      %v1277 = vsel %vm1274, %v1276, %v1272
      %v1278 = vmul.f32 1.0, %v1277
      %v1279 = vrcp.pop %v1247
      %v1280 = vmul.f32 %v1247, %v1279
      %v1281 = vsub.f32 1.0, %v1280
      %v1282 = vmul.f32 %v1279, %v1281
      %v1283 = vadd.f32 %v1279, %v1282
      %vm1284 = vweird.f32 %v1247
      %vm1285 = vweird.f32 %v1279
      %vm1286 = vmor %vm1284, %vm1285
      %v1287 = vsel %vm1286, %v1279, %v1283
      %v1288 = vand.u32 2147483647, %v1247
      %vm1289 = vcmp.eq.f32.partialorder %v1288, 8.507059e+37
      %v1290 = vand.u32 %v1247, 2147483648
      %v1291 = vor.u32 1.1754944e-38, %v1290
      %v1292 = vsel %vm1289, %v1291, %v1287
      %v1293 = vmul.f32 1.0, %v1292
      %v1294 = vrcp.pop %v1248
      %v1295 = vmul.f32 %v1248, %v1294
      %v1296 = vsub.f32 1.0, %v1295
      %v1297 = vmul.f32 %v1294, %v1296
      %v1298 = vadd.f32 %v1294, %v1297
      %vm1299 = vweird.f32 %v1248
      %vm1300 = vweird.f32 %v1294
      %vm1301 = vmor %vm1299, %vm1300
      %v1302 = vsel %vm1301, %v1294, %v1298
      %v1303 = vand.u32 2147483647, %v1248
      %vm1304 = vcmp.eq.f32.partialorder %v1303, 8.507059e+37
      %v1305 = vand.u32 %v1248, 2147483648
      %v1306 = vor.u32 1.1754944e-38, %v1305
      %v1307 = vsel %vm1304, %v1306, %v1302
      %v1308 = vmul.f32 1.0, %v1307
      %1310 = vset.pattern.permute.xlu0 3
      %1311 = vperm.xlu0 %1310, %v1263
      %v1312 = vpop.permute.xlu0 %1311
      %1315 = vset.pattern.permute.xlu0 3
      %1316 = vperm.xlu0 %1315, %v1278
      %v1317 = vpop.permute.xlu0 %1316
      %1320 = vset.pattern.permute.xlu0 3
      %1321 = vperm.xlu0 %1320, %v1293
      %v1322 = vpop.permute.xlu0 %1321
      %1325 = vset.pattern.permute.xlu0 3
      %1326 = vperm.xlu0 %1325, %v1308
      %v1327 = vpop.permute.xlu0 %1326
      %v1329 = vmul.f32 %v1107, %v1312
      %v1330 = vmul.f32 %v1108, %v1312
      %v1331 = vmul.f32 %v1109, %v1317
      %v1332 = vmul.f32 %v1110, %v1317
      %v1333 = vmul.f32 %v1111, %v1322
      %v1334 = vmul.f32 %v1112, %v1322
      %v1335 = vmul.f32 %v1113, %v1327
      %v1336 = vmul.f32 %v1114, %v1327
      %v1337 = vld [vmem:[%s3] sm:$0xff]
      %1338 = vset.pattern.permute.xlu0 2
      %1339 = vperm.xlu0 %1338, %v254
      %v1340 = vpop.permute.xlu0 %1339
      %vm1342 = vcmask 261120
      %v1344 = vsel %vm1342, %v1337, 0
      %1346 = vmatpush.msra.mxu0 0.0
      %1347 = vmatpush.msra.mxu0 0.0
      %1348 = vmatpush.msra.mxu0 0.0
      %1349 = vmatpush.msra.mxu0 0.0
      %1350 = vmatpush.msra.mxu0 0.0
      %1351 = vmatpush.msra.mxu0 0.0
      %1352 = vmatpush.msra.mxu0 0.0
      %1353 = vmatpush.msra.mxu0 0.0
      %1354 = vmatpush.msra.mxu0 0.0
      %1355 = vmatpush.msra.mxu0 0.0
      %1356 = vmatpush.msra.mxu0 0.0
      %1357 = vmatpush.msra.mxu0 0.0
      %1358 = vmatpush.msra.mxu0 %v1335
      %1359 = vmatpush.msra.mxu0 %v1333
      %1360 = vmatpush.msra.mxu0 %v1331
      %1361 = vmatpush.msra.mxu0 %v1329
      %1362 = vmatmul.f32.gmra.mxu0 %v1344
      %v1363 = vpop.f32.mrf.mxu0
      %v1364 = vadd.f32 %v1340, %v1363
      %1365 = vdwg.mxu0
      %1366 = vmatpush.msra.mxu0 0.0
      %1367 = vmatpush.msra.mxu0 0.0
      %1368 = vmatpush.msra.mxu0 0.0
      %1369 = vmatpush.msra.mxu0 0.0
      %1370 = vmatpush.msra.mxu0 0.0
      %1371 = vmatpush.msra.mxu0 0.0
      %1372 = vmatpush.msra.mxu0 0.0
      %1373 = vmatpush.msra.mxu0 0.0
      %1374 = vmatpush.msra.mxu0 0.0
      %1375 = vmatpush.msra.mxu0 0.0
      %1376 = vmatpush.msra.mxu0 0.0
      %1377 = vmatpush.msra.mxu0 0.0
      %1378 = vmatpush.msra.mxu0 %v1336
      %1379 = vmatpush.msra.mxu0 %v1334
      %1380 = vmatpush.msra.mxu0 %v1332
      %1381 = vmatpush.msra.mxu0 %v1330
      %1382 = vmatmul.f32.gmra.mxu0 %v1344
      %v1383 = vpop.f32.mrf.mxu0
      %v1384 = vadd.f32 %v1340, %v1383
      %1385 = vdwg.mxu0
      %v1386 = vadd.f32 %v1364, %v252
      %v1387 = vadd.f32 %v1384, %v253
      %1388 = vst [vmem:[%s251] sm:$0xff] %v1386
      %1389 = vst [vmem:[%s251 + $0x8] sm:$0xff] %v1387
      %p1390 = scmp.lt.s32.totalorder %s17, 1
      %s1391 = scalar_select %p1390, %s17, 1
      %s1392 = smul.addr %s1391, 2
      %s1393 = smul.addr %s1392, 8
      %s1394 = scalar_lea.vmem %s6, %s1393
      // Predicated region
      $region45: #{mbconv_forward.1} parent=43 // pred_check
        %p1395 = pneg %p166
      $region46: #{mbconv_forward.1} parent=43 // pred_check_branch
        %1397 = sbr.rel (%p1395) target = $region48
      $region47: #{mbconv_forward.1} parent=43 // pred_region
        _
      $region48: #{mbconv_forward.1} parent=43 // pred_fallthru
        _
    $region44: #{mbconv_forward.1} parent=5 // pred_fallthru
      _
    %p1398 = scmp.le.s32.totalorder 2, %s12
    // Predicated region
    $region49: #{mbconv_forward.1} parent=5 // pred_check
      %p1399 = pneg %p1398
    $region50: #{mbconv_forward.1} parent=5 // pred_check_branch
      %1401 = sbr.rel (%p1399) target = $region52
    $region51: #{mbconv_forward.1} parent=5 // pred_region
      %s1402 = ssub.s32 %s12, 2
      // Predicated region
      $region53: #{mbconv_forward.1} parent=51 // pred_check
        %p1403 = pneg %p172
      $region54: #{mbconv_forward.1} parent=51 // pred_check_branch
        %1405 = sbr.rel (%p1403) target = $region56
      $region55: #{mbconv_forward.1} parent=51 // pred_region
        %p1406 = scmp.lt.s32.totalorder %s18, 1
        %s1407 = scalar_select %p1406, %s18, 1
        %s1408 = smul.addr %s1407, 2
        %s1409 = smul.addr %s1408, 8
        %s1410 = scalar_lea.vmem %s6, %s1409
      $region56: #{mbconv_forward.1} parent=51 // pred_fallthru
        _
    $region52: #{mbconv_forward.1} parent=5 // pred_fallthru
      _
  $region6: #{mbconv_forward.1} parent=0 // loop_footer
    %s16 = sadd.s32 1, %s12
  $region7: #{mbconv_forward.1} parent=0 // loop_footer_branch
    %11 = sbr.rel target = $region3
  $region8: #{mbconv_forward.1} parent=0 // loop_exit
    _

</llo_original>
